<compile_context>
chip_gen: v6e
topology: v6e:2x2x1
jax: 0.10.0
libtpu: 0.0.40
codegen_flags: <defaults>
</compile_context>

<pallas_src>
import math

import jax
import jax.numpy as jnp
from jax import lax
from jax.experimental import pallas as pl
from jax.experimental.pallas import tpu as pltpu


L_TILE = 128                # lanes per grid step (multiple of 128 -> unmasked stores)
_DW_K = 7                   # depthwise kernel size (padding = _DW_K // 2 = 3)
_INV_SQRT2 = 1.0 / math.sqrt(2.0)


# ----------------------------------------------------------------------------
# In-kernel helpers
# ----------------------------------------------------------------------------
def _erf(z):
    """erf via Abramowitz & Stegun 7.1.26 (|err| <= 1.5e-7); uses only exp + VPU ops."""
    a1, a2, a3, a4, a5 = 0.254829592, -0.284496736, 1.421413741, -1.453152027, 1.061405429
    p = 0.3275911
    az = jnp.abs(z)
    t = 1.0 / (1.0 + p * az)
    poly = ((((a5 * t + a4) * t + a3) * t + a2) * t + a1) * t
    y = 1.0 - poly * jnp.exp(-az * az)
    return jnp.where(z >= 0, y, -y)


def _gelu_exact(x):
    return 0.5 * x * (1.0 + _erf(x * _INV_SQRT2))


def _make_kernel(C, lt, eps):
    """Fused ConvNeXtBlock kernel for one (batch, L-tile) grid point."""

    def kernel(xh_ref, wdw_ref, bdw_ref, s_ref, sh_ref,
               w1_ref, b1_ref, w2_ref, b2_ref, g_ref, o_ref):
        xh = xh_ref[0, 0]                                      # (C, lt + 6) f32, VMEM

        # --- depthwise conv1d (k=7), taps unrolled; halo columns already in the tile ---
        acc = jnp.zeros((C, lt), jnp.float32)
        for k in range(_DW_K):
            acc = acc + xh[:, k:k + lt] * wdw_ref[:, k:k + 1]
        acc = acc + bdw_ref[...]

        # --- LayerNorm over channels (sublane axis) + per-(batch,)channel scale/shift ---
        mu = jnp.mean(acc, axis=0, keepdims=True)              # (1, lt)
        xc = acc - mu
        var = jnp.mean(xc * xc, axis=0, keepdims=True)
        xn = xc * lax.rsqrt(var + eps)
        xn = xn * s_ref[0] + sh_ref[0]                         # (C,1) scale / shift

        # --- pwconv1 (Linear C -> I) on the MXU: bf16 operands, f32 accumulation ---
        h = jnp.dot(w1_ref[...].astype(jnp.bfloat16), xn.astype(jnp.bfloat16),
                    preferred_element_type=jnp.float32) + b1_ref[...]
        h = _gelu_exact(h)

        # --- pwconv2 (Linear I -> C) ---
        y = jnp.dot(w2_ref[...].astype(jnp.bfloat16), h.astype(jnp.bfloat16),
                    preferred_element_type=jnp.float32) + b2_ref[...]

        # --- layer scale + residual (residual = center columns of the halo tile) ---
        o_ref[0] = xh[:, _DW_K // 2:_DW_K // 2 + lt] + g_ref[...] * y

    return kernel


# ----------------------------------------------------------------------------
# Wrapper
# ----------------------------------------------------------------------------
def convnext_block_forward(x, params, *, cond_embedding_id=None,
                           eps=1e-6, l_tile=L_TILE):
    """Fused ConvNeXtBlock forward.  x: (B, C, L) float32 -> (B, C, L) float32."""
    B, C, L = x.shape
    inter = params['w1'].shape[0]
    pad = _DW_K // 2
    T = pl.cdiv(L, l_tile)
    L_pad = T * l_tile

    x = x.astype(jnp.float32)
    # right-pad L to a tile multiple + the depthwise-conv zero padding of 3 each side
    xp = jnp.pad(x, ((0, 0), (0, 0), (pad, pad + L_pad - L)))            # (B, C, L_pad+6)
    # haloed, NON-overlapping tile view: tile t needs xp[:, :, t*lt : t*lt + lt + 6]
    x_halo = jnp.stack(
        [xp[:, :, t * l_tile: t * l_tile + l_tile + 2 * pad] for t in range(T)],
        axis=1)                                                          # (B, T, C, lt+6)

    # LayerNorm (elementwise affine) or AdaLayerNorm (per-batch embedding scale/shift)
    if cond_embedding_id is None:
        s = jnp.broadcast_to(params['ln_w'][None, :, None], (B, C, 1))
        sh = jnp.broadcast_to(params['ln_b'][None, :, None], (B, C, 1))
    else:
        s = jnp.take(params['ada_scale'], cond_embedding_id, axis=0)[:, :, None]
        sh = jnp.take(params['ada_shift'], cond_embedding_id, axis=0)[:, :, None]
    s = s.astype(jnp.float32)
    sh = sh.astype(jnp.float32)

    wdw = params['dw_w'].reshape(C, _DW_K).astype(jnp.float32)           # (C,1,7)->(C,7)
    bdw = params['dw_b'].reshape(C, 1).astype(jnp.float32)
    w1 = params['w1'].astype(jnp.float32)                                # (I, C)
    b1 = params['b1'].reshape(inter, 1).astype(jnp.float32)
    w2 = params['w2'].astype(jnp.float32)                                # (C, I)
    b2 = params['b2'].reshape(C, 1).astype(jnp.float32)
    gamma = params.get('gamma')
    gamma = (gamma if gamma is not None else jnp.ones((C,), jnp.float32))
    gamma = gamma.reshape(C, 1).astype(jnp.float32)

    kernel = _make_kernel(C, l_tile, eps)
    const2d = lambda b, t: (0, 0)

    out = pl.pallas_call(
        kernel,
        out_shape=jax.ShapeDtypeStruct((B, C, L_pad), jnp.float32),
        grid=(B, T),
        in_specs=[
            pl.BlockSpec((1, 1, C, l_tile + 2 * pad), lambda b, t: (b, t, 0, 0)),
            pl.BlockSpec((C, _DW_K), const2d),
            pl.BlockSpec((C, 1), const2d),
            pl.BlockSpec((1, C, 1), lambda b, t: (b, 0, 0)),
            pl.BlockSpec((1, C, 1), lambda b, t: (b, 0, 0)),
            pl.BlockSpec((inter, C), const2d),
            pl.BlockSpec((inter, 1), const2d),
            pl.BlockSpec((C, inter), const2d),
            pl.BlockSpec((C, 1), const2d),
            pl.BlockSpec((C, 1), const2d),
        ],
        out_specs=pl.BlockSpec((1, C, l_tile), lambda b, t: (b, 0, t)),
        compiler_params=pltpu.CompilerParams(
            dimension_semantics=("parallel", "parallel"),
            vmem_limit_bytes=48 * 1024 * 1024),
    )(x_halo, wdw, bdw, s, sh, w1, b1, w2, b2, gamma)

    return out[:, :, :L]


# ----------------------------------------------------------------------------
# Pure-JAX (XLA) reference with PyTorch ConvNeXtBlock semantics, for validation
# ----------------------------------------------------------------------------
def _reference_forward(x, params, eps=1e-6):
    B, C, L = x.shape
    xp = jnp.pad(x, ((0, 0), (0, 0), (_DW_K // 2, _DW_K // 2)))
    w = params['dw_w']                                                    # (C, 1, 7)
    dw = sum(xp[:, :, k:k + L] * w[:, 0, k][None, :, None] for k in range(_DW_K))
    dw = dw + params['dw_b'][None, :, None]
    t = jnp.transpose(dw, (0, 2, 1))                                      # (B, L, C)
    mu = jnp.mean(t, axis=-1, keepdims=True)
    var = jnp.mean((t - mu) ** 2, axis=-1, keepdims=True)
    tn = (t - mu) / jnp.sqrt(var + eps) * params['ln_w'] + params['ln_b']
    h = tn @ params['w1'].T + params['b1']
    h = 0.5 * h * (1.0 + jax.scipy.special.erf(h * _INV_SQRT2))           # exact GELU
    y = h @ params['w2'].T + params['b2']
    if params.get('gamma') is not None:
        y = y * params['gamma']
    return x + jnp.transpose(y, (0, 2, 1))


# ----------------------------------------------------------------------------
# Deterministic parameter construction (shapes from ConvNeXtBlock.__init__)
# ----------------------------------------------------------------------------
def make_params(key, dim, intermediate_dim, layer_scale_init_value,
                adanorm_num_embeddings=None):
    ks = jax.random.split(key, 6)
    p = {
        'dw_w': 0.3 * jax.random.normal(ks[0], (dim, 1, _DW_K), jnp.float32),
        'dw_b': 0.1 * jax.random.normal(ks[1], (dim,), jnp.float32),
        'ln_w': jnp.ones((dim,), jnp.float32),                 # nn.LayerNorm init
        'ln_b': jnp.zeros((dim,), jnp.float32),
        'w1': (1.0 / math.sqrt(dim))
              * jax.random.normal(ks[2], (intermediate_dim, dim), jnp.float32),
        'b1': 0.1 * jax.random.normal(ks[3], (intermediate_dim,), jnp.float32),
        'w2': (1.0 / math.sqrt(intermediate_dim))
              * jax.random.normal(ks[4], (dim, intermediate_dim), jnp.float32),
        'b2': 0.1 * jax.random.normal(ks[5], (dim,), jnp.float32),
        'gamma': (layer_scale_init_value * jnp.ones((dim,), jnp.float32)
                  if layer_scale_init_value > 0 else None),
    }
    if adanorm_num_embeddings is not None:                      # AdaLayerNorm init
        p['ada_scale'] = jnp.ones((adanorm_num_embeddings, dim), jnp.float32)
        p['ada_shift'] = jnp.zeros((adanorm_num_embeddings, dim), jnp.float32)
    return p


# ----------------------------------------------------------------------------
if __name__ == "__main__":
    # Small but representative config; L deliberately NOT a multiple of 128 to
    # exercise the pad-to-lane-dense-tile + crop path.
    B, C, L = 2, 64, 200
    INTERMEDIATE = 128
    LAYER_SCALE = 0.1

    key = jax.random.PRNGKey(0)
    kx, kp = jax.random.split(key)
    x = jax.random.normal(kx, (B, C, L), jnp.float32)
    params = make_params(kp, C, INTERMEDIATE, LAYER_SCALE)

    fwd = jax.jit(convnext_block_forward)
    y = fwd(x, params)
    y = jax.block_until_ready(y)

    assert y.shape == (B, C, L), y.shape
    assert bool(jnp.all(jnp.isfinite(y)))

    # Validate against the pure-XLA reference (loose tolerance: bf16 MXU operands).
    y_ref = _reference_forward(x, params)
    err = float(jnp.max(jnp.abs(y - y_ref)))
    assert err < 5e-2, f"max abs error vs reference: {err}"

    print("KERNEL_OK")
</pallas_src>

<mosaic_0001>
module attributes {stable_mosaic.version = 11 : i64} {
  func.func @kernel(%arg0: i32, %arg1: i32, %arg2: memref<1x1x64x134xf32, #tpu.memory_space<vmem>>, %arg3: memref<64x7xf32, #tpu.memory_space<vmem>>, %arg4: memref<64x1xf32, #tpu.memory_space<vmem>>, %arg5: memref<1x64x1xf32, #tpu.memory_space<vmem>>, %arg6: memref<1x64x1xf32, #tpu.memory_space<vmem>>, %arg7: memref<128x64xf32, #tpu.memory_space<vmem>>, %arg8: memref<128x1xf32, #tpu.memory_space<vmem>>, %arg9: memref<64x128xf32, #tpu.memory_space<vmem>>, %arg10: memref<64x1xf32, #tpu.memory_space<vmem>>, %arg11: memref<64x1xf32, #tpu.memory_space<vmem>>, %arg12: memref<1x64x128xf32, #tpu.memory_space<vmem>>) attributes {dimension_semantics = [#tpu.dimension_semantics<parallel>, #tpu.dimension_semantics<parallel>], iteration_bounds = array<i64: 2, 2>, scalar_prefetch = 0 : i64, scratch_operands = 0 : i64, tpu.core_type = #tpu.core_type<tc>, window_params = [{transform_indices = @transform_0, window_bounds = array<i64: 1, 1, 64, 134>}, {pipeline_mode = #tpu.pipeline_mode<synchronous>, transform_indices = @transform_1, window_bounds = array<i64: 64, 7>}, {pipeline_mode = #tpu.pipeline_mode<synchronous>, transform_indices = @transform_2, window_bounds = array<i64: 64, 1>}, {transform_indices = @transform_3, window_bounds = array<i64: 1, 64, 1>}, {transform_indices = @transform_4, window_bounds = array<i64: 1, 64, 1>}, {pipeline_mode = #tpu.pipeline_mode<synchronous>, transform_indices = @transform_5, window_bounds = array<i64: 128, 64>}, {pipeline_mode = #tpu.pipeline_mode<synchronous>, transform_indices = @transform_6, window_bounds = array<i64: 128, 1>}, {pipeline_mode = #tpu.pipeline_mode<synchronous>, transform_indices = @transform_7, window_bounds = array<i64: 64, 128>}, {pipeline_mode = #tpu.pipeline_mode<synchronous>, transform_indices = @transform_8, window_bounds = array<i64: 64, 1>}, {pipeline_mode = #tpu.pipeline_mode<synchronous>, transform_indices = @transform_9, window_bounds = array<i64: 64, 1>}, {transform_indices = @transform_10, window_bounds = array<i64: 1, 64, 128>}]} {
    %c0 = arith.constant 0 : index
    %c0_0 = arith.constant 0 : index
    %c0_1 = arith.constant 0 : index
    %c0_2 = arith.constant 0 : index
    %0 = vector.load %arg2[%c0, %c0_0, %c0_1, %c0_2] : memref<1x1x64x134xf32, #tpu.memory_space<vmem>>, vector<1x1x64x134xf32>
    %1 = vector.shape_cast %0 : vector<1x1x64x134xf32> to vector<64x134xf32>
    %cst = arith.constant 0.000000e+00 : f32
    %2 = vector.broadcast %cst : f32 to vector<64x128xf32>
    %3 = vector.extract_strided_slice %1 {offsets = [0, 0], sizes = [64, 128], strides = [1, 1]} : vector<64x134xf32> to vector<64x128xf32>
    %c0_3 = arith.constant 0 : index
    %c0_4 = arith.constant 0 : index
    %4 = vector.load %arg3[%c0_3, %c0_4] : memref<64x7xf32, #tpu.memory_space<vmem>>, vector<64x1xf32>
    %5 = vector.broadcast %4 : vector<64x1xf32> to vector<64x128xf32>
    %6 = arith.mulf %3, %5 : vector<64x128xf32>
    %7 = arith.addf %2, %6 : vector<64x128xf32>
    %8 = vector.extract_strided_slice %1 {offsets = [0, 1], sizes = [64, 128], strides = [1, 1]} : vector<64x134xf32> to vector<64x128xf32>
    %c0_5 = arith.constant 0 : index
    %c1 = arith.constant 1 : index
    %9 = vector.load %arg3[%c0_5, %c1] : memref<64x7xf32, #tpu.memory_space<vmem>>, vector<64x1xf32>
    %10 = vector.broadcast %9 : vector<64x1xf32> to vector<64x128xf32>
    %11 = arith.mulf %8, %10 : vector<64x128xf32>
    %12 = arith.addf %7, %11 : vector<64x128xf32>
    %13 = vector.extract_strided_slice %1 {offsets = [0, 2], sizes = [64, 128], strides = [1, 1]} : vector<64x134xf32> to vector<64x128xf32>
    %c0_6 = arith.constant 0 : index
    %c2 = arith.constant 2 : index
    %14 = vector.load %arg3[%c0_6, %c2] : memref<64x7xf32, #tpu.memory_space<vmem>>, vector<64x1xf32>
    %15 = vector.broadcast %14 : vector<64x1xf32> to vector<64x128xf32>
    %16 = arith.mulf %13, %15 : vector<64x128xf32>
    %17 = arith.addf %12, %16 : vector<64x128xf32>
    %18 = vector.extract_strided_slice %1 {offsets = [0, 3], sizes = [64, 128], strides = [1, 1]} : vector<64x134xf32> to vector<64x128xf32>
    %c0_7 = arith.constant 0 : index
    %c3 = arith.constant 3 : index
    %19 = vector.load %arg3[%c0_7, %c3] : memref<64x7xf32, #tpu.memory_space<vmem>>, vector<64x1xf32>
    %20 = vector.broadcast %19 : vector<64x1xf32> to vector<64x128xf32>
    %21 = arith.mulf %18, %20 : vector<64x128xf32>
    %22 = arith.addf %17, %21 : vector<64x128xf32>
    %23 = vector.extract_strided_slice %1 {offsets = [0, 4], sizes = [64, 128], strides = [1, 1]} : vector<64x134xf32> to vector<64x128xf32>
    %c0_8 = arith.constant 0 : index
    %c4 = arith.constant 4 : index
    %24 = vector.load %arg3[%c0_8, %c4] : memref<64x7xf32, #tpu.memory_space<vmem>>, vector<64x1xf32>
    %25 = vector.broadcast %24 : vector<64x1xf32> to vector<64x128xf32>
    %26 = arith.mulf %23, %25 : vector<64x128xf32>
    %27 = arith.addf %22, %26 : vector<64x128xf32>
    %28 = vector.extract_strided_slice %1 {offsets = [0, 5], sizes = [64, 128], strides = [1, 1]} : vector<64x134xf32> to vector<64x128xf32>
    %c0_9 = arith.constant 0 : index
    %c5 = arith.constant 5 : index
    %29 = vector.load %arg3[%c0_9, %c5] : memref<64x7xf32, #tpu.memory_space<vmem>>, vector<64x1xf32>
    %30 = vector.broadcast %29 : vector<64x1xf32> to vector<64x128xf32>
    %31 = arith.mulf %28, %30 : vector<64x128xf32>
    %32 = arith.addf %27, %31 : vector<64x128xf32>
    %33 = vector.extract_strided_slice %1 {offsets = [0, 6], sizes = [64, 128], strides = [1, 1]} : vector<64x134xf32> to vector<64x128xf32>
    %c0_10 = arith.constant 0 : index
    %c6 = arith.constant 6 : index
    %34 = vector.load %arg3[%c0_10, %c6] : memref<64x7xf32, #tpu.memory_space<vmem>>, vector<64x1xf32>
    %35 = vector.broadcast %34 : vector<64x1xf32> to vector<64x128xf32>
    %36 = arith.mulf %33, %35 : vector<64x128xf32>
    %37 = arith.addf %32, %36 : vector<64x128xf32>
    %c0_11 = arith.constant 0 : index
    %c0_12 = arith.constant 0 : index
    %38 = vector.load %arg4[%c0_11, %c0_12] : memref<64x1xf32, #tpu.memory_space<vmem>>, vector<64x1xf32>
    %39 = vector.broadcast %38 : vector<64x1xf32> to vector<64x128xf32>
    %40 = arith.addf %37, %39 : vector<64x128xf32>
    %cst_13 = arith.constant dense<0.000000e+00> : vector<128xf32>
    %41 = vector.multi_reduction <add>, %40, %cst_13 [0] : vector<64x128xf32> to vector<128xf32>
    %42 = vector.shape_cast %41 : vector<128xf32> to vector<1x128xf32>
    %cst_14 = arith.constant 6.400000e+01 : f32
    %43 = vector.broadcast %cst_14 : f32 to vector<1x128xf32>
    %44 = arith.divf %42, %43 : vector<1x128xf32>
    %45 = vector.broadcast %44 : vector<1x128xf32> to vector<64x128xf32>
    %46 = arith.subf %40, %45 : vector<64x128xf32>
    %47 = arith.mulf %46, %46 : vector<64x128xf32>
    %cst_15 = arith.constant dense<0.000000e+00> : vector<128xf32>
    %48 = vector.multi_reduction <add>, %47, %cst_15 [0] : vector<64x128xf32> to vector<128xf32>
    %49 = vector.shape_cast %48 : vector<128xf32> to vector<1x128xf32>
    %cst_16 = arith.constant 6.400000e+01 : f32
    %50 = vector.broadcast %cst_16 : f32 to vector<1x128xf32>
    %51 = arith.divf %49, %50 : vector<1x128xf32>
    %cst_17 = arith.constant 9.99999997E-7 : f32
    %52 = vector.broadcast %cst_17 : f32 to vector<1x128xf32>
    %53 = arith.addf %51, %52 : vector<1x128xf32>
    %54 = math.rsqrt %53 : vector<1x128xf32>
    %55 = vector.broadcast %54 : vector<1x128xf32> to vector<64x128xf32>
    %56 = arith.mulf %46, %55 : vector<64x128xf32>
    %c0_18 = arith.constant 0 : index
    %c0_19 = arith.constant 0 : index
    %c0_20 = arith.constant 0 : index
    %57 = vector.load %arg5[%c0_18, %c0_19, %c0_20] : memref<1x64x1xf32, #tpu.memory_space<vmem>>, vector<1x64x1xf32>
    %58 = vector.shape_cast %57 : vector<1x64x1xf32> to vector<64x1xf32>
    %59 = vector.broadcast %58 : vector<64x1xf32> to vector<64x128xf32>
    %60 = arith.mulf %56, %59 : vector<64x128xf32>
    %c0_21 = arith.constant 0 : index
    %c0_22 = arith.constant 0 : index
    %c0_23 = arith.constant 0 : index
    %61 = vector.load %arg6[%c0_21, %c0_22, %c0_23] : memref<1x64x1xf32, #tpu.memory_space<vmem>>, vector<1x64x1xf32>
    %62 = vector.shape_cast %61 : vector<1x64x1xf32> to vector<64x1xf32>
    %63 = vector.broadcast %62 : vector<64x1xf32> to vector<64x128xf32>
    %64 = arith.addf %60, %63 : vector<64x128xf32>
    %c0_24 = arith.constant 0 : index
    %c0_25 = arith.constant 0 : index
    %65 = vector.load %arg7[%c0_24, %c0_25] : memref<128x64xf32, #tpu.memory_space<vmem>>, vector<128x64xf32>
    %66 = arith.truncf %65 : vector<128x64xf32> to vector<128x64xbf16>
    %67 = arith.truncf %64 : vector<64x128xf32> to vector<64x128xbf16>
    %cst_26 = arith.constant dense<0.000000e+00> : vector<128x128xf32>
    %68 = tpu.matmul %66, %67, %cst_26 {dimension_numbers = #tpu.dot_dimension_numbers<[1], [0], [0], [1], [0, 0, 1, 1], [], []>} : vector<128x64xbf16>, vector<64x128xbf16>, vector<128x128xf32> -> vector<128x128xf32>
    %c0_27 = arith.constant 0 : index
    %c0_28 = arith.constant 0 : index
    %69 = vector.load %arg8[%c0_27, %c0_28] : memref<128x1xf32, #tpu.memory_space<vmem>>, vector<128x1xf32>
    %70 = vector.broadcast %69 : vector<128x1xf32> to vector<128x128xf32>
    %71 = arith.addf %68, %70 : vector<128x128xf32>
    %cst_29 = arith.constant 5.000000e-01 : f32
    %72 = vector.broadcast %cst_29 : f32 to vector<128x128xf32>
    %73 = arith.mulf %72, %71 : vector<128x128xf32>
    %cst_30 = arith.constant 0.707106769 : f32
    %74 = vector.broadcast %cst_30 : f32 to vector<128x128xf32>
    %75 = arith.mulf %71, %74 : vector<128x128xf32>
    %76 = math.absf %75 : vector<128x128xf32>
    %cst_31 = arith.constant 0.327591091 : f32
    %77 = vector.broadcast %cst_31 : f32 to vector<128x128xf32>
    %78 = arith.mulf %77, %76 : vector<128x128xf32>
    %cst_32 = arith.constant 1.000000e+00 : f32
    %79 = vector.broadcast %cst_32 : f32 to vector<128x128xf32>
    %80 = arith.addf %79, %78 : vector<128x128xf32>
    %cst_33 = arith.constant 1.000000e+00 : f32
    %81 = vector.broadcast %cst_33 : f32 to vector<128x128xf32>
    %82 = arith.divf %81, %80 : vector<128x128xf32>
    %cst_34 = arith.constant 1.06140542 : f32
    %83 = vector.broadcast %cst_34 : f32 to vector<128x128xf32>
    %84 = arith.mulf %83, %82 : vector<128x128xf32>
    %cst_35 = arith.constant -1.45315206 : f32
    %85 = vector.broadcast %cst_35 : f32 to vector<128x128xf32>
    %86 = arith.addf %84, %85 : vector<128x128xf32>
    %87 = arith.mulf %86, %82 : vector<128x128xf32>
    %cst_36 = arith.constant 1.42141378 : f32
    %88 = vector.broadcast %cst_36 : f32 to vector<128x128xf32>
    %89 = arith.addf %87, %88 : vector<128x128xf32>
    %90 = arith.mulf %89, %82 : vector<128x128xf32>
    %cst_37 = arith.constant -0.284496725 : f32
    %91 = vector.broadcast %cst_37 : f32 to vector<128x128xf32>
    %92 = arith.addf %90, %91 : vector<128x128xf32>
    %93 = arith.mulf %92, %82 : vector<128x128xf32>
    %cst_38 = arith.constant 0.254829586 : f32
    %94 = vector.broadcast %cst_38 : f32 to vector<128x128xf32>
    %95 = arith.addf %93, %94 : vector<128x128xf32>
    %96 = arith.mulf %95, %82 : vector<128x128xf32>
    %cst_39 = arith.constant 0.000000e+00 : f32
    %97 = vector.broadcast %cst_39 : f32 to vector<128x128xf32>
    %98 = arith.subf %97, %76 : vector<128x128xf32>
    %99 = arith.mulf %98, %76 : vector<128x128xf32>
    %100 = math.exp %99 : vector<128x128xf32>
    %101 = arith.mulf %96, %100 : vector<128x128xf32>
    %cst_40 = arith.constant 1.000000e+00 : f32
    %102 = vector.broadcast %cst_40 : f32 to vector<128x128xf32>
    %103 = arith.subf %102, %101 : vector<128x128xf32>
    %cst_41 = arith.constant 0.000000e+00 : f32
    %104 = vector.broadcast %cst_41 : f32 to vector<128x128xf32>
    %105 = arith.cmpf oge, %75, %104 : vector<128x128xf32>
    %cst_42 = arith.constant 0.000000e+00 : f32
    %106 = vector.broadcast %cst_42 : f32 to vector<128x128xf32>
    %107 = arith.subf %106, %103 : vector<128x128xf32>
    %108 = arith.select %105, %103, %107 : vector<128x128xi1>, vector<128x128xf32>
    %cst_43 = arith.constant 1.000000e+00 : f32
    %109 = vector.broadcast %cst_43 : f32 to vector<128x128xf32>
    %110 = arith.addf %109, %108 : vector<128x128xf32>
    %111 = arith.mulf %73, %110 : vector<128x128xf32>
    %c0_44 = arith.constant 0 : index
    %c0_45 = arith.constant 0 : index
    %112 = vector.load %arg9[%c0_44, %c0_45] : memref<64x128xf32, #tpu.memory_space<vmem>>, vector<64x128xf32>
    %113 = arith.truncf %112 : vector<64x128xf32> to vector<64x128xbf16>
    %114 = arith.truncf %111 : vector<128x128xf32> to vector<128x128xbf16>
    %cst_46 = arith.constant dense<0.000000e+00> : vector<64x128xf32>
    %115 = tpu.matmul %113, %114, %cst_46 {dimension_numbers = #tpu.dot_dimension_numbers<[1], [0], [0], [1], [0, 0, 1, 1], [], []>} : vector<64x128xbf16>, vector<128x128xbf16>, vector<64x128xf32> -> vector<64x128xf32>
    %c0_47 = arith.constant 0 : index
    %c0_48 = arith.constant 0 : index
    %116 = vector.load %arg10[%c0_47, %c0_48] : memref<64x1xf32, #tpu.memory_space<vmem>>, vector<64x1xf32>
    %117 = vector.broadcast %116 : vector<64x1xf32> to vector<64x128xf32>
    %118 = arith.addf %115, %117 : vector<64x128xf32>
    %119 = vector.extract_strided_slice %1 {offsets = [0, 3], sizes = [64, 128], strides = [1, 1]} : vector<64x134xf32> to vector<64x128xf32>
    %c0_49 = arith.constant 0 : index
    %c0_50 = arith.constant 0 : index
    %120 = vector.load %arg11[%c0_49, %c0_50] : memref<64x1xf32, #tpu.memory_space<vmem>>, vector<64x1xf32>
    %121 = vector.broadcast %120 : vector<64x1xf32> to vector<64x128xf32>
    %122 = arith.mulf %121, %118 : vector<64x128xf32>
    %123 = arith.addf %119, %122 : vector<64x128xf32>
    %c0_51 = arith.constant 0 : index
    %c0_52 = arith.constant 0 : index
    %c0_53 = arith.constant 0 : index
    %124 = vector.load %arg12[%c0_51, %c0_52, %c0_53] : memref<1x64x128xf32, #tpu.memory_space<vmem>>, vector<1x64x128xf32>
    %125 = vector.shape_cast %124 : vector<1x64x128xf32> to vector<64x128xf32>
    %126 = vector.shape_cast %123 : vector<64x128xf32> to vector<1x64x128xf32>
    tpu.vector_store %arg12[%c0_51, %c0_52, %c0_53], %126 {strides = array<i32>} : memref<1x64x128xf32, #tpu.memory_space<vmem>>, vector<1x64x128xf32>,
    return
  }
  func.func @transform_0(%arg0: i32, %arg1: i32) -> (i32, i32, i32, i32) {
    %c0_i32 = arith.constant 0 : i32
    %c0_i32_0 = arith.constant 0 : i32
    %c0_i32_1 = arith.constant 0 : i32
    return %arg0, %arg1, %c0_i32, %c0_i32_0 : i32, i32, i32, i32
  }
  func.func @transform_1(%arg0: i32, %arg1: i32) -> (i32, i32) {
    %c0_i32 = arith.constant 0 : i32
    %c0_i32_0 = arith.constant 0 : i32
    %c0_i32_1 = arith.constant 0 : i32
    return %c0_i32, %c0_i32_0 : i32, i32
  }
  func.func @transform_2(%arg0: i32, %arg1: i32) -> (i32, i32) {
    %c0_i32 = arith.constant 0 : i32
    %c0_i32_0 = arith.constant 0 : i32
    %c0_i32_1 = arith.constant 0 : i32
    return %c0_i32, %c0_i32_0 : i32, i32
  }
  func.func @transform_3(%arg0: i32, %arg1: i32) -> (i32, i32, i32) {
    %c0_i32 = arith.constant 0 : i32
    %c0_i32_0 = arith.constant 0 : i32
    %c0_i32_1 = arith.constant 0 : i32
    return %arg0, %c0_i32, %c0_i32_0 : i32, i32, i32
  }
  func.func @transform_4(%arg0: i32, %arg1: i32) -> (i32, i32, i32) {
    %c0_i32 = arith.constant 0 : i32
    %c0_i32_0 = arith.constant 0 : i32
    %c0_i32_1 = arith.constant 0 : i32
    return %arg0, %c0_i32, %c0_i32_0 : i32, i32, i32
  }
  func.func @transform_5(%arg0: i32, %arg1: i32) -> (i32, i32) {
    %c0_i32 = arith.constant 0 : i32
    %c0_i32_0 = arith.constant 0 : i32
    %c0_i32_1 = arith.constant 0 : i32
    return %c0_i32, %c0_i32_0 : i32, i32
  }
  func.func @transform_6(%arg0: i32, %arg1: i32) -> (i32, i32) {
    %c0_i32 = arith.constant 0 : i32
    %c0_i32_0 = arith.constant 0 : i32
    %c0_i32_1 = arith.constant 0 : i32
    return %c0_i32, %c0_i32_0 : i32, i32
  }
  func.func @transform_7(%arg0: i32, %arg1: i32) -> (i32, i32) {
    %c0_i32 = arith.constant 0 : i32
    %c0_i32_0 = arith.constant 0 : i32
    %c0_i32_1 = arith.constant 0 : i32
    return %c0_i32, %c0_i32_0 : i32, i32
  }
  func.func @transform_8(%arg0: i32, %arg1: i32) -> (i32, i32) {
    %c0_i32 = arith.constant 0 : i32
    %c0_i32_0 = arith.constant 0 : i32
    %c0_i32_1 = arith.constant 0 : i32
    return %c0_i32, %c0_i32_0 : i32, i32
  }
  func.func @transform_9(%arg0: i32, %arg1: i32) -> (i32, i32) {
    %c0_i32 = arith.constant 0 : i32
    %c0_i32_0 = arith.constant 0 : i32
    %c0_i32_1 = arith.constant 0 : i32
    return %c0_i32, %c0_i32_0 : i32, i32
  }
  func.func @transform_10(%arg0: i32, %arg1: i32) -> (i32, i32, i32) {
    %c0_i32 = arith.constant 0 : i32
    %c0_i32_0 = arith.constant 0 : i32
    return %arg0, %c0_i32, %arg1 : i32, i32, i32
  }
}

</mosaic_0001>

<llo_original>
// kernel: convnext_block_forward.1
$region0: #{convnext_block_forward.1}
  #allocation0 [shape = 'u32[]', space=smem, size = 0x4, offset = 0x4, fixed_abs, tag = 'smem constant byte address 0x4 - core index']
  #allocation1 [shape = 'u32[144,128]{1,0:T(1,128)}', space=vmem, size = 0x12000, scoped, tag = 'internal scratch']
  %s0 = inlined_call_operand.vmem [shape: f32[2,2,64,134], index: 0, kind: input, shape index: {}]
  %s1 = inlined_call_operand.vmem [shape: f32[64,7], index: 1, kind: input, shape index: {}]
  %s2 = inlined_call_operand.vmem [shape: f32[64,1], index: 2, kind: input, shape index: {}]
  %s3 = inlined_call_operand.vmem [shape: f32[2,64,1], index: 3, kind: input, shape index: {}]
  %s4 = inlined_call_operand.vmem [shape: f32[2,64,1], index: 4, kind: input, shape index: {}]
  %s5 = inlined_call_operand.vmem [shape: f32[128,64], index: 5, kind: input, shape index: {}]
  %s6 = inlined_call_operand.vmem [shape: f32[128,1], index: 6, kind: input, shape index: {}]
  %s7 = inlined_call_operand.vmem [shape: f32[64,128], index: 7, kind: input, shape index: {}]
  %s8 = inlined_call_operand.vmem [shape: f32[64,1], index: 8, kind: input, shape index: {}]
  %s9 = inlined_call_operand.vmem [shape: f32[64,1], index: 9, kind: input, shape index: {}]
  %s10 = inlined_call_operand.hbm [shape: f32[2,64,256], index: 10, kind: output, shape index: {}]
  %s11 = sld [smem:[#allocation0]]
  $region73: #{convnext_block_forward.1} parent=0
    _
  %s13 = ssub.s32 1, %s11
  %s14 = scalar_select 0, %s13, %s11
  $region1: #{convnext_block_forward.1} parent=0
    #allocation2 [shape = 'u8[65536]{0}', space=vmem, size = 0x10000, scoped, tag = 'output window, operand 0']
    #allocation3 [shape = 's32[2]{0}', space=sflag, size = 0x8, scoped, tag = 'scoped memory for convnext_block_forward.1']
    %15 = vsyncpa [#allocation3], 0
    %s16 = scalar_lea.sflag [#allocation3], 1
    %17 = vsyncpa %s16, 0
    loop: start=0, step=1, limit=6
    $region2: #{convnext_block_forward.1} parent=1 // loop_pre_header
      _
    $region3: #{convnext_block_forward.1} parent=1 // loop_header
      %s19 = sphi 0, %s23
      %p20 = scmp.ge.s32.totalorder %s19, 6
      %s26 = sphi 0, %s38
      %s27 = sphi 0, %s34
      %s28 = sphi 0, %s26
      %s29 = sphi 0, %s27
      %s30 = sphi 0, %s28
      %s31 = sphi 0, %s29
      %s43 = sphi 0, %s45
      %s46 = sphi 0, %s43
      %s47 = sphi 0, %s46
      %s63 = sphi 0, %s47
      %s67 = sphi 0, %s67
      %s69 = sphi 0, %s67
      %s70 = sphi 0, %s69
      %s84 = sphi 0, %s70
      %s88 = sphi 0, %s88
      %s90 = sphi 0, %s88
      %s91 = sphi 0, %s90
      %s105 = sphi 0, %s91
      %s111 = sphi 0, %s113
      %s114 = sphi 0, %s111
      %s115 = sphi 0, %s114
      %s131 = sphi 0, %s115
      %s137 = sphi 0, %s139
      %s140 = sphi 0, %s137
      %s141 = sphi 0, %s140
      %s157 = sphi 0, %s141
      %s161 = sphi 0, %s161
      %s163 = sphi 0, %s161
      %s164 = sphi 0, %s163
      %s178 = sphi 0, %s164
      %s182 = sphi 0, %s182
      %s184 = sphi 0, %s182
      %s185 = sphi 0, %s184
      %s199 = sphi 0, %s185
      %s203 = sphi 0, %s203
      %s205 = sphi 0, %s203
      %s206 = sphi 0, %s205
      %s220 = sphi 0, %s206
      %s224 = sphi 0, %s224
      %s226 = sphi 0, %s224
      %s227 = sphi 0, %s226
      %s241 = sphi 0, %s227
      %s245 = sphi 0, %s245
      %s247 = sphi 0, %s245
      %s248 = sphi 0, %s247
      %s262 = sphi 0, %s248
      %s270 = sphi 0, %s272
      %s273 = sphi 0, %s270
      %s274 = sphi 0, %s273
      %s290 = sphi 0, %s274
    $region4: #{convnext_block_forward.1} parent=1 // loop_header_branch
      %22 = sbr.rel (%p20) target = $region8
    $region5: #{convnext_block_forward.1} parent=1 // loop_body
      %s24 = ssub.s32 %s19, 1
      %s25 = ssub.s32 %s19, 2
      %s32 = sadd.s32 1, %s27
      %p33 = scmp.ge.s32.totalorder %s32, 2
      %s34 = scalar_select %p33, 0, %s32
      %s35 = sadd.s32 1, %s26
      %s36 = scalar_select %p33, %s35, %s26
      %p37 = scmp.ge.s32.totalorder %s36, 2
      %s38 = scalar_select %p37, 0, %s36
      %s39 = ssub.s32 %s26, %s38
      %s40 = ssub.s32 %s27, %s34
      %s41 = sor.u32 %s39, %s40
      %p42 = scmp.eq.s32.totalorder %s41, 0
      %s44 = sadd.s32 %s43, 1
      %s45 = scalar_select %p42, %s43, %s44
      %p48 = pneg %p42
      %p49 = scmp.eq.s32.totalorder %s19, 3
      %p50 = por %p48, %p49
      %p51 = scmp.ne.s32.totalorder %s43, %s46
      %p52 = scmp.eq.s32.totalorder %s19, 0
      %p53 = por %p51, %p52
      %p54 = scmp.ne.s32.totalorder %s43, %s46
      %p55 = scmp.eq.s32.totalorder %s24, 3
      %p56 = por %p54, %p55
      %p57 = scmp.ne.s32.totalorder %s46, %s47
      %p58 = scmp.eq.s32.totalorder %s24, 0
      %p59 = por %p57, %p58
      %p60 = scmp.ne.s32.totalorder %s46, %s47
      %p61 = scmp.eq.s32.totalorder %s25, 3
      %p62 = por %p60, %p61
      %p64 = scmp.ne.s32.totalorder %s47, %s63
      %p65 = scmp.eq.s32.totalorder %s25, 0
      %p66 = por %p64, %p65
      %s68 = sadd.s32 %s67, 1
      %p71 = scmp.eq.s32.totalorder %s19, 3
      %p72 = scmp.ne.s32.totalorder %s67, %s69
      %p73 = scmp.eq.s32.totalorder %s19, 0
      %p74 = por %p72, %p73
      %p75 = scmp.ne.s32.totalorder %s67, %s69
      %p76 = scmp.eq.s32.totalorder %s24, 3
      %p77 = por %p75, %p76
      %p78 = scmp.ne.s32.totalorder %s69, %s70
      %p79 = scmp.eq.s32.totalorder %s24, 0
      %p80 = por %p78, %p79
      %p81 = scmp.ne.s32.totalorder %s69, %s70
      %p82 = scmp.eq.s32.totalorder %s25, 3
      %p83 = por %p81, %p82
      %p85 = scmp.ne.s32.totalorder %s70, %s84
      %p86 = scmp.eq.s32.totalorder %s25, 0
      %p87 = por %p85, %p86
      %s89 = sadd.s32 %s88, 1
      %p92 = scmp.eq.s32.totalorder %s19, 3
      %p93 = scmp.ne.s32.totalorder %s88, %s90
      %p94 = scmp.eq.s32.totalorder %s19, 0
      %p95 = por %p93, %p94
      %p96 = scmp.ne.s32.totalorder %s88, %s90
      %p97 = scmp.eq.s32.totalorder %s24, 3
      %p98 = por %p96, %p97
      %p99 = scmp.ne.s32.totalorder %s90, %s91
      %p100 = scmp.eq.s32.totalorder %s24, 0
      %p101 = por %p99, %p100
      %p102 = scmp.ne.s32.totalorder %s90, %s91
      %p103 = scmp.eq.s32.totalorder %s25, 3
      %p104 = por %p102, %p103
      %p106 = scmp.ne.s32.totalorder %s91, %s105
      %p107 = scmp.eq.s32.totalorder %s25, 0
      %p108 = por %p106, %p107
      %s109 = ssub.s32 %s26, %s38
      %p110 = scmp.eq.s32.totalorder %s109, 0
      %s112 = sadd.s32 %s111, 1
      %s113 = scalar_select %p110, %s111, %s112
      %p116 = pneg %p110
      %p117 = scmp.eq.s32.totalorder %s19, 3
      %p118 = por %p116, %p117
      %p119 = scmp.ne.s32.totalorder %s111, %s114
      %p120 = scmp.eq.s32.totalorder %s19, 0
      %p121 = por %p119, %p120
      %p122 = scmp.ne.s32.totalorder %s111, %s114
      %p123 = scmp.eq.s32.totalorder %s24, 3
      %p124 = por %p122, %p123
      %p125 = scmp.ne.s32.totalorder %s114, %s115
      %p126 = scmp.eq.s32.totalorder %s24, 0
      %p127 = por %p125, %p126
      %p128 = scmp.ne.s32.totalorder %s114, %s115
      %p129 = scmp.eq.s32.totalorder %s25, 3
      %p130 = por %p128, %p129
      %p132 = scmp.ne.s32.totalorder %s115, %s131
      %p133 = scmp.eq.s32.totalorder %s25, 0
      %p134 = por %p132, %p133
      %s135 = ssub.s32 %s26, %s38
      %p136 = scmp.eq.s32.totalorder %s135, 0
      %s138 = sadd.s32 %s137, 1
      %s139 = scalar_select %p136, %s137, %s138
      %p142 = pneg %p136
      %p143 = scmp.eq.s32.totalorder %s19, 3
      %p144 = por %p142, %p143
      %p145 = scmp.ne.s32.totalorder %s137, %s140
      %p146 = scmp.eq.s32.totalorder %s19, 0
      %p147 = por %p145, %p146
      %p148 = scmp.ne.s32.totalorder %s137, %s140
      %p149 = scmp.eq.s32.totalorder %s24, 3
      %p150 = por %p148, %p149
      %p151 = scmp.ne.s32.totalorder %s140, %s141
      %p152 = scmp.eq.s32.totalorder %s24, 0
      %p153 = por %p151, %p152
      %p154 = scmp.ne.s32.totalorder %s140, %s141
      %p155 = scmp.eq.s32.totalorder %s25, 3
      %p156 = por %p154, %p155
      %p158 = scmp.ne.s32.totalorder %s141, %s157
      %p159 = scmp.eq.s32.totalorder %s25, 0
      %p160 = por %p158, %p159
      %s162 = sadd.s32 %s161, 1
      %p165 = scmp.eq.s32.totalorder %s19, 3
      %p166 = scmp.ne.s32.totalorder %s161, %s163
      %p167 = scmp.eq.s32.totalorder %s19, 0
      %p168 = por %p166, %p167
      %p169 = scmp.ne.s32.totalorder %s161, %s163
      %p170 = scmp.eq.s32.totalorder %s24, 3
      %p171 = por %p169, %p170
      %p172 = scmp.ne.s32.totalorder %s163, %s164
      %p173 = scmp.eq.s32.totalorder %s24, 0
      %p174 = por %p172, %p173
      %p175 = scmp.ne.s32.totalorder %s163, %s164
      %p176 = scmp.eq.s32.totalorder %s25, 3
      %p177 = por %p175, %p176
      %p179 = scmp.ne.s32.totalorder %s164, %s178
      %p180 = scmp.eq.s32.totalorder %s25, 0
      %p181 = por %p179, %p180
      %s183 = sadd.s32 %s182, 1
      %p186 = scmp.eq.s32.totalorder %s19, 3
      %p187 = scmp.ne.s32.totalorder %s182, %s184
      %p188 = scmp.eq.s32.totalorder %s19, 0
      %p189 = por %p187, %p188
      %p190 = scmp.ne.s32.totalorder %s182, %s184
      %p191 = scmp.eq.s32.totalorder %s24, 3
      %p192 = por %p190, %p191
      %p193 = scmp.ne.s32.totalorder %s184, %s185
      %p194 = scmp.eq.s32.totalorder %s24, 0
      %p195 = por %p193, %p194
      %p196 = scmp.ne.s32.totalorder %s184, %s185
      %p197 = scmp.eq.s32.totalorder %s25, 3
      %p198 = por %p196, %p197
      %p200 = scmp.ne.s32.totalorder %s185, %s199
      %p201 = scmp.eq.s32.totalorder %s25, 0
      %p202 = por %p200, %p201
      %s204 = sadd.s32 %s203, 1
      %p207 = scmp.eq.s32.totalorder %s19, 3
      %p208 = scmp.ne.s32.totalorder %s203, %s205
      %p209 = scmp.eq.s32.totalorder %s19, 0
      %p210 = por %p208, %p209
      %p211 = scmp.ne.s32.totalorder %s203, %s205
      %p212 = scmp.eq.s32.totalorder %s24, 3
      %p213 = por %p211, %p212
      %p214 = scmp.ne.s32.totalorder %s205, %s206
      %p215 = scmp.eq.s32.totalorder %s24, 0
      %p216 = por %p214, %p215
      %p217 = scmp.ne.s32.totalorder %s205, %s206
      %p218 = scmp.eq.s32.totalorder %s25, 3
      %p219 = por %p217, %p218
      %p221 = scmp.ne.s32.totalorder %s206, %s220
      %p222 = scmp.eq.s32.totalorder %s25, 0
      %p223 = por %p221, %p222
      %s225 = sadd.s32 %s224, 1
      %p228 = scmp.eq.s32.totalorder %s19, 3
      %p229 = scmp.ne.s32.totalorder %s224, %s226
      %p230 = scmp.eq.s32.totalorder %s19, 0
      %p231 = por %p229, %p230
      %p232 = scmp.ne.s32.totalorder %s224, %s226
      %p233 = scmp.eq.s32.totalorder %s24, 3
      %p234 = por %p232, %p233
      %p235 = scmp.ne.s32.totalorder %s226, %s227
      %p236 = scmp.eq.s32.totalorder %s24, 0
      %p237 = por %p235, %p236
      %p238 = scmp.ne.s32.totalorder %s226, %s227
      %p239 = scmp.eq.s32.totalorder %s25, 3
      %p240 = por %p238, %p239
      %p242 = scmp.ne.s32.totalorder %s227, %s241
      %p243 = scmp.eq.s32.totalorder %s25, 0
      %p244 = por %p242, %p243
      %s246 = sadd.s32 %s245, 1
      %p249 = scmp.eq.s32.totalorder %s19, 3
      %p250 = scmp.ne.s32.totalorder %s245, %s247
      %p251 = scmp.eq.s32.totalorder %s19, 0
      %p252 = por %p250, %p251
      %p253 = scmp.ne.s32.totalorder %s245, %s247
      %p254 = scmp.eq.s32.totalorder %s24, 3
      %p255 = por %p253, %p254
      %p256 = scmp.ne.s32.totalorder %s247, %s248
      %p257 = scmp.eq.s32.totalorder %s24, 0
      %p258 = por %p256, %p257
      %p259 = scmp.ne.s32.totalorder %s247, %s248
      %p260 = scmp.eq.s32.totalorder %s25, 3
      %p261 = por %p259, %p260
      %p263 = scmp.ne.s32.totalorder %s248, %s262
      %p264 = scmp.eq.s32.totalorder %s25, 0
      %p265 = por %p263, %p264
      %s266 = ssub.s32 %s26, %s38
      %s267 = ssub.s32 %s27, %s34
      %s268 = sor.u32 %s266, %s267
      %p269 = scmp.eq.s32.totalorder %s268, 0
      %s271 = sadd.s32 %s270, 1
      %s272 = scalar_select %p269, %s270, %s271
      %p275 = pneg %p269
      %p276 = scmp.eq.s32.totalorder %s19, 3
      %p277 = por %p275, %p276
      %p278 = scmp.ne.s32.totalorder %s270, %s273
      %p279 = scmp.eq.s32.totalorder %s19, 0
      %p280 = por %p278, %p279
      %p281 = scmp.ne.s32.totalorder %s270, %s273
      %p282 = scmp.eq.s32.totalorder %s24, 3
      %p283 = por %p281, %p282
      %p284 = scmp.ne.s32.totalorder %s273, %s274
      %p285 = scmp.eq.s32.totalorder %s24, 0
      %p286 = por %p284, %p285
      %p287 = scmp.ne.s32.totalorder %s273, %s274
      %p288 = scmp.eq.s32.totalorder %s25, 3
      %p289 = por %p287, %p288
      %p291 = scmp.ne.s32.totalorder %s274, %s290
      %p292 = scmp.eq.s32.totalorder %s25, 0
      %p293 = por %p291, %p292
      %p294 = scmp.le.s32.totalorder 1, %s19
      %p295 = scmp.lt.s32.totalorder %s19, 5
      %p296 = pnand %p294, %p295
      %p297 = pneg %p296
      // Predicated region
      $region9: #{convnext_block_forward.1} parent=5 // pred_check
        _
      $region10: #{convnext_block_forward.1} parent=5 // pred_check_branch
        %299 = sbr.rel (%p296) target = $region12
      $region11: #{convnext_block_forward.1} parent=5 // pred_region
        %s300 = ssub.s32 %s19, 1
        // Predicated region
        $region13: #{convnext_block_forward.1} parent=11 // pred_check
          %p301 = pneg %p80
        $region14: #{convnext_block_forward.1} parent=11 // pred_check_branch
          %303 = sbr.rel (%p301) target = $region16
        $region15: #{convnext_block_forward.1} parent=11 // pred_region
          _
        $region16: #{convnext_block_forward.1} parent=11 // pred_fallthru
          _
        // Predicated region
        $region17: #{convnext_block_forward.1} parent=11 // pred_check
          %p304 = pneg %p101
        $region18: #{convnext_block_forward.1} parent=11 // pred_check_branch
          %306 = sbr.rel (%p304) target = $region20
        $region19: #{convnext_block_forward.1} parent=11 // pred_region
          _
        $region20: #{convnext_block_forward.1} parent=11 // pred_fallthru
          _
        // Predicated region
        $region21: #{convnext_block_forward.1} parent=11 // pred_check
          %p307 = pneg %p174
        $region22: #{convnext_block_forward.1} parent=11 // pred_check_branch
          %309 = sbr.rel (%p307) target = $region24
        $region23: #{convnext_block_forward.1} parent=11 // pred_region
          _
        $region24: #{convnext_block_forward.1} parent=11 // pred_fallthru
          _
        // Predicated region
        $region25: #{convnext_block_forward.1} parent=11 // pred_check
          %p310 = pneg %p195
        $region26: #{convnext_block_forward.1} parent=11 // pred_check_branch
          %312 = sbr.rel (%p310) target = $region28
        $region27: #{convnext_block_forward.1} parent=11 // pred_region
          _
        $region28: #{convnext_block_forward.1} parent=11 // pred_fallthru
          _
        // Predicated region
        $region29: #{convnext_block_forward.1} parent=11 // pred_check
          %p313 = pneg %p216
        $region30: #{convnext_block_forward.1} parent=11 // pred_check_branch
          %315 = sbr.rel (%p313) target = $region32
        $region31: #{convnext_block_forward.1} parent=11 // pred_region
          _
        $region32: #{convnext_block_forward.1} parent=11 // pred_fallthru
          _
        // Predicated region
        $region33: #{convnext_block_forward.1} parent=11 // pred_check
          %p316 = pneg %p237
        $region34: #{convnext_block_forward.1} parent=11 // pred_check_branch
          %318 = sbr.rel (%p316) target = $region36
        $region35: #{convnext_block_forward.1} parent=11 // pred_region
          _
        $region36: #{convnext_block_forward.1} parent=11 // pred_fallthru
          _
        // Predicated region
        $region37: #{convnext_block_forward.1} parent=11 // pred_check
          %p319 = pneg %p258
        $region38: #{convnext_block_forward.1} parent=11 // pred_check_branch
          %321 = sbr.rel (%p319) target = $region40
        $region39: #{convnext_block_forward.1} parent=11 // pred_region
          _
        $region40: #{convnext_block_forward.1} parent=11 // pred_fallthru
          _
      $region12: #{convnext_block_forward.1} parent=5 // pred_fallthru
        _
      %p322 = scmp.lt.s32.totalorder %s19, 4
      // Predicated region
      $region41: #{convnext_block_forward.1} parent=5 // pred_check
        %p323 = pneg %p322
      $region42: #{convnext_block_forward.1} parent=5 // pred_check_branch
        %325 = sbr.rel (%p323) target = $region44
      $region43: #{convnext_block_forward.1} parent=5 // pred_region
        // Predicated region
        $region45: #{convnext_block_forward.1} parent=43 // pred_check
          %p326 = pneg %p53
        $region46: #{convnext_block_forward.1} parent=43 // pred_check_branch
          %328 = sbr.rel (%p326) target = $region48
        $region47: #{convnext_block_forward.1} parent=43 // pred_region
          %p329 = scmp.lt.s32.totalorder %s26, 1
          %s330 = scalar_select %p329, %s26, 1
          %p331 = scmp.lt.s32.totalorder %s27, 1
          %s332 = scalar_select %p331, %s27, 1
          %s333 = smul.addr %s332, 16
          %s334 = smul.addr %s330, 32
          %s335 = sadd.s32 %s333, %s334
          %s336 = smul.addr %s335, 8
          %s337 = scalar_lea.vmem %s0, %s336
        $region48: #{convnext_block_forward.1} parent=43 // pred_fallthru
          _
        // Predicated region
        $region49: #{convnext_block_forward.1} parent=43 // pred_check
          %p338 = pneg %p121
        $region50: #{convnext_block_forward.1} parent=43 // pred_check_branch
          %340 = sbr.rel (%p338) target = $region52
        $region51: #{convnext_block_forward.1} parent=43 // pred_region
          %p341 = scmp.lt.s32.totalorder %s26, 1
          %s342 = scalar_select %p341, %s26, 1
          %s343 = smul.addr %s342, 8
          %s344 = smul.addr %s343, 8
          %s345 = scalar_lea.vmem %s3, %s344
        $region52: #{convnext_block_forward.1} parent=43 // pred_fallthru
          _
        // Predicated region
        $region53: #{convnext_block_forward.1} parent=43 // pred_check
          %p346 = pneg %p147
        $region54: #{convnext_block_forward.1} parent=43 // pred_check_branch
          %348 = sbr.rel (%p346) target = $region56
        $region55: #{convnext_block_forward.1} parent=43 // pred_region
          %p349 = scmp.lt.s32.totalorder %s26, 1
          %s350 = scalar_select %p349, %s26, 1
          %s351 = smul.addr %s350, 8
          %s352 = smul.addr %s351, 8
          %s353 = scalar_lea.vmem %s4, %s352
        $region56: #{convnext_block_forward.1} parent=43 // pred_fallthru
          _
      $region44: #{convnext_block_forward.1} parent=5 // pred_fallthru
        _
      %p354 = scmp.le.s32.totalorder 1, %s19
      %p355 = scmp.lt.s32.totalorder %s19, 5
      %p356 = pnand %p354, %p355
      %p357 = pneg %p356
      // Predicated region
      $region57: #{convnext_block_forward.1} parent=5 // pred_check
        _
      $region58: #{convnext_block_forward.1} parent=5 // pred_check_branch
        %359 = sbr.rel (%p356) target = $region60
      $region59: #{convnext_block_forward.1} parent=5 // pred_region
        %s360 = ssub.s32 %s19, 1
        %p361 = scmp.lt.s32.totalorder %s28, 1
        %s362 = scalar_select %p361, %s28, 1
        %p363 = scmp.lt.s32.totalorder %s29, 1
        %s364 = scalar_select %p363, %s29, 1
        %s365 = smul.addr %s364, 16
        %s366 = smul.addr %s362, 32
        %s367 = sadd.s32 %s365, %s366
        %s368 = smul.addr %s367, 8
        %s369 = scalar_lea.vmem %s0, %s368
        %p370 = pneg %p59
        %p371 = pneg %p56
        %p372 = pneg %p80
        %p373 = pneg %p77
        %p374 = pneg %p101
        %p375 = pneg %p98
        %p376 = scmp.lt.s32.totalorder %s28, 1
        %s377 = scalar_select %p376, %s28, 1
        %s378 = smul.addr %s377, 8
        %s379 = smul.addr %s378, 8
        %s380 = scalar_lea.vmem %s3, %s379
        %p381 = pneg %p127
        %p382 = pneg %p124
        %p383 = scmp.lt.s32.totalorder %s28, 1
        %s384 = scalar_select %p383, %s28, 1
        %s385 = smul.addr %s384, 8
        %s386 = smul.addr %s385, 8
        %s387 = scalar_lea.vmem %s4, %s386
        %p388 = pneg %p153
        %p389 = pneg %p150
        %p390 = pneg %p174
        %p391 = pneg %p171
        %p392 = pneg %p195
        %p393 = pneg %p192
        %p394 = pneg %p216
        %p395 = pneg %p213
        %p396 = pneg %p237
        %p397 = pneg %p234
        %p398 = pneg %p258
        %p399 = pneg %p255
        %p400 = pneg %p286
        %p401 = pneg %p283
        %s402 = sand.u32 %s273, 1
        %s403 = scalar_lea.sflag [#allocation3], %s402
        %s404 = sand.u32 %s273, 1
        %s405 = smul.addr %s404, 64
        %s406 = scalar_lea.vmem [#allocation2], %s405
        %p407 = scmp.lt.s32.totalorder %s28, 1
        %s408 = scalar_select %p407, %s28, 1
        %p409 = scmp.lt.s32.totalorder %s29, 1
        %s410 = scalar_select %p409, %s29, 1
        %s411 = smul.addr %s410, 16
        %s412 = smul.addr %s408, 32
        %s413 = sadd.s32 %s411, %s412
        %s414 = smul.addr %s413, 8
        %s415 = scalar_lea.vmem %s0, %s414
        %p416 = scmp.lt.s32.totalorder %s28, 1
        %s417 = scalar_select %p416, %s28, 1
        %s418 = smul.addr %s417, 8
        %s419 = smul.addr %s418, 8
        %s420 = scalar_lea.vmem %s3, %s419
        %p421 = scmp.lt.s32.totalorder %s28, 1
        %s422 = scalar_select %p421, %s28, 1
        %s423 = smul.addr %s422, 8
        %s424 = smul.addr %s423, 8
        %s425 = scalar_lea.vmem %s4, %s424
        %v427 = vld [vmem:[%s415] sm:$0xff]
        %v428 = vld [vmem:[%s415 + $0x8] sm:$0xff]
        %v429 = vld [vmem:[%s415 + $0x10] sm:$0xff]
        %v430 = vld [vmem:[%s415 + $0x18] sm:$0xff]
        %v431 = vld [vmem:[%s415 + $0x20] sm:$0xff]
        %v432 = vld [vmem:[%s415 + $0x28] sm:$0xff]
        %v433 = vld [vmem:[%s415 + $0x30] sm:$0xff]
        %v434 = vld [vmem:[%s415 + $0x38] sm:$0xff]
        %v435 = vld [vmem:[%s415 + $0x40] sm:$0xff]
        %v436 = vld [vmem:[%s415 + $0x48] sm:$0xff]
        %v437 = vld [vmem:[%s415 + $0x50] sm:$0xff]
        %v438 = vld [vmem:[%s415 + $0x58] sm:$0xff]
        %v439 = vld [vmem:[%s415 + $0x60] sm:$0xff]
        %v440 = vld [vmem:[%s415 + $0x68] sm:$0xff]
        %v441 = vld [vmem:[%s415 + $0x70] sm:$0xff]
        %v442 = vld [vmem:[%s415 + $0x78] sm:$0xff]
        %v443 = vld [vmem:[%s1] sm:$0xff]
        %v444 = vld [vmem:[%s1 + $0x8] sm:$0xff]
        %v445 = vld [vmem:[%s1 + $0x10] sm:$0xff]
        %v446 = vld [vmem:[%s1 + $0x18] sm:$0xff]
        %v447 = vld [vmem:[%s1 + $0x20] sm:$0xff]
        %v448 = vld [vmem:[%s1 + $0x28] sm:$0xff]
        %v449 = vld [vmem:[%s1 + $0x30] sm:$0xff]
        %v450 = vld [vmem:[%s1 + $0x38] sm:$0xff]
        %452 = vset.pattern.permute.xlu0 0
        %453 = vperm.xlu0 %452, %v443
        %v454 = vpop.permute.xlu0 %453
        %457 = vset.pattern.permute.xlu0 0
        %458 = vperm.xlu0 %457, %v444
        %v459 = vpop.permute.xlu0 %458
        %462 = vset.pattern.permute.xlu0 0
        %463 = vperm.xlu0 %462, %v445
        %v464 = vpop.permute.xlu0 %463
        %467 = vset.pattern.permute.xlu0 0
        %468 = vperm.xlu0 %467, %v446
        %v469 = vpop.permute.xlu0 %468
        %472 = vset.pattern.permute.xlu0 0
        %473 = vperm.xlu0 %472, %v447
        %v474 = vpop.permute.xlu0 %473
        %477 = vset.pattern.permute.xlu0 0
        %478 = vperm.xlu0 %477, %v448
        %v479 = vpop.permute.xlu0 %478
        %482 = vset.pattern.permute.xlu0 0
        %483 = vperm.xlu0 %482, %v449
        %v484 = vpop.permute.xlu0 %483
        %487 = vset.pattern.permute.xlu0 0
        %488 = vperm.xlu0 %487, %v450
        %v489 = vpop.permute.xlu0 %488
        %v491 = vmul.f32 %v427, %v454
        %v492 = vmul.f32 %v429, %v459
        %v493 = vmul.f32 %v431, %v464
        %v494 = vmul.f32 %v433, %v469
        %v495 = vmul.f32 %v435, %v474
        %v496 = vmul.f32 %v437, %v479
        %v497 = vmul.f32 %v439, %v484
        %v498 = vmul.f32 %v441, %v489
        %v499 = vadd.f32 %v491, 0.0
        %v500 = vadd.f32 %v492, 0.0
        %v501 = vadd.f32 %v493, 0.0
        %v502 = vadd.f32 %v494, 0.0
        %v503 = vadd.f32 %v495, 0.0
        %v504 = vadd.f32 %v496, 0.0
        %v505 = vadd.f32 %v497, 0.0
        %v506 = vadd.f32 %v498, 0.0
        %507 = vset.pattern.permute.xlu0 1
        %508 = vperm.xlu0 %507, %v443
        %v509 = vpop.permute.xlu0 %508
        %511 = vset.pattern.permute.xlu0 1
        %512 = vperm.xlu0 %511, %v444
        %v513 = vpop.permute.xlu0 %512
        %515 = vset.pattern.permute.xlu0 1
        %516 = vperm.xlu0 %515, %v445
        %v517 = vpop.permute.xlu0 %516
        %519 = vset.pattern.permute.xlu0 1
        %520 = vperm.xlu0 %519, %v446
        %v521 = vpop.permute.xlu0 %520
        %523 = vset.pattern.permute.xlu0 1
        %524 = vperm.xlu0 %523, %v447
        %v525 = vpop.permute.xlu0 %524
        %527 = vset.pattern.permute.xlu0 1
        %528 = vperm.xlu0 %527, %v448
        %v529 = vpop.permute.xlu0 %528
        %531 = vset.pattern.permute.xlu0 1
        %532 = vperm.xlu0 %531, %v449
        %v533 = vpop.permute.xlu0 %532
        %535 = vset.pattern.permute.xlu0 1
        %536 = vperm.xlu0 %535, %v450
        %v537 = vpop.permute.xlu0 %536
        %v539 = vmul.f32 %v427, %v509
        %v540 = vmul.f32 %v428, %v509
        %v541 = vmul.f32 %v429, %v513
        %v542 = vmul.f32 %v430, %v513
        %v543 = vmul.f32 %v431, %v517
        %v544 = vmul.f32 %v432, %v517
        %v545 = vmul.f32 %v433, %v521
        %v546 = vmul.f32 %v434, %v521
        %v547 = vmul.f32 %v435, %v525
        %v548 = vmul.f32 %v436, %v525
        %v549 = vmul.f32 %v437, %v529
        %v550 = vmul.f32 %v438, %v529
        %v551 = vmul.f32 %v439, %v533
        %v552 = vmul.f32 %v440, %v533
        %v553 = vmul.f32 %v441, %v537
        %v554 = vmul.f32 %v442, %v537
        %571 = vrot.lane.b32.xlu0 %v539, 127
        %v572 = vpop.permute.xlu0 %571
        %573 = vrot.lane.b32.xlu0 %v540, 127
        %v574 = vpop.permute.xlu0 %573
        %575 = vrot.lane.b32.xlu0 %v541, 127
        %v576 = vpop.permute.xlu0 %575
        %577 = vrot.lane.b32.xlu0 %v542, 127
        %v578 = vpop.permute.xlu0 %577
        %579 = vrot.lane.b32.xlu0 %v543, 127
        %v580 = vpop.permute.xlu0 %579
        %581 = vrot.lane.b32.xlu0 %v544, 127
        %v582 = vpop.permute.xlu0 %581
        %583 = vrot.lane.b32.xlu0 %v545, 127
        %v584 = vpop.permute.xlu0 %583
        %585 = vrot.lane.b32.xlu0 %v546, 127
        %v586 = vpop.permute.xlu0 %585
        %587 = vrot.lane.b32.xlu0 %v547, 127
        %v588 = vpop.permute.xlu0 %587
        %589 = vrot.lane.b32.xlu0 %v548, 127
        %v590 = vpop.permute.xlu0 %589
        %591 = vrot.lane.b32.xlu0 %v549, 127
        %v592 = vpop.permute.xlu0 %591
        %593 = vrot.lane.b32.xlu0 %v550, 127
        %v594 = vpop.permute.xlu0 %593
        %595 = vrot.lane.b32.xlu0 %v551, 127
        %v596 = vpop.permute.xlu0 %595
        %597 = vrot.lane.b32.xlu0 %v552, 127
        %v598 = vpop.permute.xlu0 %597
        %599 = vrot.lane.b32.xlu0 %v553, 127
        %v600 = vpop.permute.xlu0 %599
        %601 = vrot.lane.b32.xlu0 %v554, 127
        %v602 = vpop.permute.xlu0 %601
        %vm603 = vcmask 1039360
        %v604 = vsel %vm603, %v572, %v574
        %v605 = vsel %vm603, %v576, %v578
        %v606 = vsel %vm603, %v580, %v582
        %v607 = vsel %vm603, %v584, %v586
        %v608 = vsel %vm603, %v588, %v590
        %v609 = vsel %vm603, %v592, %v594
        %v610 = vsel %vm603, %v596, %v598
        %v611 = vsel %vm603, %v600, %v602
        %v620 = vadd.f32 %v499, %v604
        %v621 = vadd.f32 %v500, %v605
        %v622 = vadd.f32 %v501, %v606
        %v623 = vadd.f32 %v502, %v607
        %v624 = vadd.f32 %v503, %v608
        %v625 = vadd.f32 %v504, %v609
        %v626 = vadd.f32 %v505, %v610
        %v627 = vadd.f32 %v506, %v611
        %628 = vset.pattern.permute.xlu0 2
        %629 = vperm.xlu0 %628, %v443
        %v630 = vpop.permute.xlu0 %629
        %632 = vset.pattern.permute.xlu0 2
        %633 = vperm.xlu0 %632, %v444
        %v634 = vpop.permute.xlu0 %633
        %636 = vset.pattern.permute.xlu0 2
        %637 = vperm.xlu0 %636, %v445
        %v638 = vpop.permute.xlu0 %637
        %640 = vset.pattern.permute.xlu0 2
        %641 = vperm.xlu0 %640, %v446
        %v642 = vpop.permute.xlu0 %641
        %644 = vset.pattern.permute.xlu0 2
        %645 = vperm.xlu0 %644, %v447
        %v646 = vpop.permute.xlu0 %645
        %648 = vset.pattern.permute.xlu0 2
        %649 = vperm.xlu0 %648, %v448
        %v650 = vpop.permute.xlu0 %649
        %652 = vset.pattern.permute.xlu0 2
        %653 = vperm.xlu0 %652, %v449
        %v654 = vpop.permute.xlu0 %653
        %656 = vset.pattern.permute.xlu0 2
        %657 = vperm.xlu0 %656, %v450
        %v658 = vpop.permute.xlu0 %657
        %v660 = vmul.f32 %v427, %v630
        %v661 = vmul.f32 %v428, %v630
        %v662 = vmul.f32 %v429, %v634
        %v663 = vmul.f32 %v430, %v634
        %v664 = vmul.f32 %v431, %v638
        %v665 = vmul.f32 %v432, %v638
        %v666 = vmul.f32 %v433, %v642
        %v667 = vmul.f32 %v434, %v642
        %v668 = vmul.f32 %v435, %v646
        %v669 = vmul.f32 %v436, %v646
        %v670 = vmul.f32 %v437, %v650
        %v671 = vmul.f32 %v438, %v650
        %v672 = vmul.f32 %v439, %v654
        %v673 = vmul.f32 %v440, %v654
        %v674 = vmul.f32 %v441, %v658
        %v675 = vmul.f32 %v442, %v658
        %692 = vrot.lane.b32.xlu0 %v660, 126
        %v693 = vpop.permute.xlu0 %692
        %694 = vrot.lane.b32.xlu0 %v661, 126
        %v695 = vpop.permute.xlu0 %694
        %696 = vrot.lane.b32.xlu0 %v662, 126
        %v697 = vpop.permute.xlu0 %696
        %698 = vrot.lane.b32.xlu0 %v663, 126
        %v699 = vpop.permute.xlu0 %698
        %700 = vrot.lane.b32.xlu0 %v664, 126
        %v701 = vpop.permute.xlu0 %700
        %702 = vrot.lane.b32.xlu0 %v665, 126
        %v703 = vpop.permute.xlu0 %702
        %704 = vrot.lane.b32.xlu0 %v666, 126
        %v705 = vpop.permute.xlu0 %704
        %706 = vrot.lane.b32.xlu0 %v667, 126
        %v707 = vpop.permute.xlu0 %706
        %708 = vrot.lane.b32.xlu0 %v668, 126
        %v709 = vpop.permute.xlu0 %708
        %710 = vrot.lane.b32.xlu0 %v669, 126
        %v711 = vpop.permute.xlu0 %710
        %712 = vrot.lane.b32.xlu0 %v670, 126
        %v713 = vpop.permute.xlu0 %712
        %714 = vrot.lane.b32.xlu0 %v671, 126
        %v715 = vpop.permute.xlu0 %714
        %716 = vrot.lane.b32.xlu0 %v672, 126
        %v717 = vpop.permute.xlu0 %716
        %718 = vrot.lane.b32.xlu0 %v673, 126
        %v719 = vpop.permute.xlu0 %718
        %720 = vrot.lane.b32.xlu0 %v674, 126
        %v721 = vpop.permute.xlu0 %720
        %722 = vrot.lane.b32.xlu0 %v675, 126
        %v723 = vpop.permute.xlu0 %722
        %vm724 = vcmask 1031168
        %v725 = vsel %vm724, %v693, %v695
        %v726 = vsel %vm724, %v697, %v699
        %v727 = vsel %vm724, %v701, %v703
        %v728 = vsel %vm724, %v705, %v707
        %v729 = vsel %vm724, %v709, %v711
        %v730 = vsel %vm724, %v713, %v715
        %v731 = vsel %vm724, %v717, %v719
        %v732 = vsel %vm724, %v721, %v723
        %v741 = vadd.f32 %v620, %v725
        %v742 = vadd.f32 %v621, %v726
        %v743 = vadd.f32 %v622, %v727
        %v744 = vadd.f32 %v623, %v728
        %v745 = vadd.f32 %v624, %v729
        %v746 = vadd.f32 %v625, %v730
        %v747 = vadd.f32 %v626, %v731
        %v748 = vadd.f32 %v627, %v732
        %749 = vset.pattern.permute.xlu0 3
        %750 = vperm.xlu0 %749, %v443
        %v751 = vpop.permute.xlu0 %750
        %753 = vset.pattern.permute.xlu0 3
        %754 = vperm.xlu0 %753, %v444
        %v755 = vpop.permute.xlu0 %754
        %757 = vset.pattern.permute.xlu0 3
        %758 = vperm.xlu0 %757, %v445
        %v759 = vpop.permute.xlu0 %758
        %761 = vset.pattern.permute.xlu0 3
        %762 = vperm.xlu0 %761, %v446
        %v763 = vpop.permute.xlu0 %762
        %765 = vset.pattern.permute.xlu0 3
        %766 = vperm.xlu0 %765, %v447
        %v767 = vpop.permute.xlu0 %766
        %769 = vset.pattern.permute.xlu0 3
        %770 = vperm.xlu0 %769, %v448
        %v771 = vpop.permute.xlu0 %770
        %773 = vset.pattern.permute.xlu0 3
        %774 = vperm.xlu0 %773, %v449
        %v775 = vpop.permute.xlu0 %774
        %777 = vset.pattern.permute.xlu0 3
        %778 = vperm.xlu0 %777, %v450
        %v779 = vpop.permute.xlu0 %778
        %v781 = vmul.f32 %v427, %v751
        %v782 = vmul.f32 %v428, %v751
        %v783 = vmul.f32 %v429, %v755
        %v784 = vmul.f32 %v430, %v755
        %v785 = vmul.f32 %v431, %v759
        %v786 = vmul.f32 %v432, %v759
        %v787 = vmul.f32 %v433, %v763
        %v788 = vmul.f32 %v434, %v763
        %v789 = vmul.f32 %v435, %v767
        %v790 = vmul.f32 %v436, %v767
        %v791 = vmul.f32 %v437, %v771
        %v792 = vmul.f32 %v438, %v771
        %v793 = vmul.f32 %v439, %v775
        %v794 = vmul.f32 %v440, %v775
        %v795 = vmul.f32 %v441, %v779
        %v796 = vmul.f32 %v442, %v779
        %813 = vrot.lane.b32.xlu0 %v781, 125
        %v814 = vpop.permute.xlu0 %813
        %815 = vrot.lane.b32.xlu0 %v782, 125
        %v816 = vpop.permute.xlu0 %815
        %817 = vrot.lane.b32.xlu0 %v783, 125
        %v818 = vpop.permute.xlu0 %817
        %819 = vrot.lane.b32.xlu0 %v784, 125
        %v820 = vpop.permute.xlu0 %819
        %821 = vrot.lane.b32.xlu0 %v785, 125
        %v822 = vpop.permute.xlu0 %821
        %823 = vrot.lane.b32.xlu0 %v786, 125
        %v824 = vpop.permute.xlu0 %823
        %825 = vrot.lane.b32.xlu0 %v787, 125
        %v826 = vpop.permute.xlu0 %825
        %827 = vrot.lane.b32.xlu0 %v788, 125
        %v828 = vpop.permute.xlu0 %827
        %829 = vrot.lane.b32.xlu0 %v789, 125
        %v830 = vpop.permute.xlu0 %829
        %831 = vrot.lane.b32.xlu0 %v790, 125
        %v832 = vpop.permute.xlu0 %831
        %833 = vrot.lane.b32.xlu0 %v791, 125
        %v834 = vpop.permute.xlu0 %833
        %835 = vrot.lane.b32.xlu0 %v792, 125
        %v836 = vpop.permute.xlu0 %835
        %837 = vrot.lane.b32.xlu0 %v793, 125
        %v838 = vpop.permute.xlu0 %837
        %839 = vrot.lane.b32.xlu0 %v794, 125
        %v840 = vpop.permute.xlu0 %839
        %841 = vrot.lane.b32.xlu0 %v795, 125
        %v842 = vpop.permute.xlu0 %841
        %843 = vrot.lane.b32.xlu0 %v796, 125
        %v844 = vpop.permute.xlu0 %843
        %vm845 = vcmask 1022976
        %v846 = vsel %vm845, %v814, %v816
        %v847 = vsel %vm845, %v818, %v820
        %v848 = vsel %vm845, %v822, %v824
        %v849 = vsel %vm845, %v826, %v828
        %v850 = vsel %vm845, %v830, %v832
        %v851 = vsel %vm845, %v834, %v836
        %v852 = vsel %vm845, %v838, %v840
        %v853 = vsel %vm845, %v842, %v844
        %v862 = vadd.f32 %v741, %v846
        %v863 = vadd.f32 %v742, %v847
        %v864 = vadd.f32 %v743, %v848
        %v865 = vadd.f32 %v744, %v849
        %v866 = vadd.f32 %v745, %v850
        %v867 = vadd.f32 %v746, %v851
        %v868 = vadd.f32 %v747, %v852
        %v869 = vadd.f32 %v748, %v853
        %870 = vset.pattern.permute.xlu0 4
        %871 = vperm.xlu0 %870, %v443
        %v872 = vpop.permute.xlu0 %871
        %874 = vset.pattern.permute.xlu0 4
        %875 = vperm.xlu0 %874, %v444
        %v876 = vpop.permute.xlu0 %875
        %878 = vset.pattern.permute.xlu0 4
        %879 = vperm.xlu0 %878, %v445
        %v880 = vpop.permute.xlu0 %879
        %882 = vset.pattern.permute.xlu0 4
        %883 = vperm.xlu0 %882, %v446
        %v884 = vpop.permute.xlu0 %883
        %886 = vset.pattern.permute.xlu0 4
        %887 = vperm.xlu0 %886, %v447
        %v888 = vpop.permute.xlu0 %887
        %890 = vset.pattern.permute.xlu0 4
        %891 = vperm.xlu0 %890, %v448
        %v892 = vpop.permute.xlu0 %891
        %894 = vset.pattern.permute.xlu0 4
        %895 = vperm.xlu0 %894, %v449
        %v896 = vpop.permute.xlu0 %895
        %898 = vset.pattern.permute.xlu0 4
        %899 = vperm.xlu0 %898, %v450
        %v900 = vpop.permute.xlu0 %899
        %v902 = vmul.f32 %v427, %v872
        %v903 = vmul.f32 %v428, %v872
        %v904 = vmul.f32 %v429, %v876
        %v905 = vmul.f32 %v430, %v876
        %v906 = vmul.f32 %v431, %v880
        %v907 = vmul.f32 %v432, %v880
        %v908 = vmul.f32 %v433, %v884
        %v909 = vmul.f32 %v434, %v884
        %v910 = vmul.f32 %v435, %v888
        %v911 = vmul.f32 %v436, %v888
        %v912 = vmul.f32 %v437, %v892
        %v913 = vmul.f32 %v438, %v892
        %v914 = vmul.f32 %v439, %v896
        %v915 = vmul.f32 %v440, %v896
        %v916 = vmul.f32 %v441, %v900
        %v917 = vmul.f32 %v442, %v900
        %934 = vrot.lane.b32.xlu0 %v902, 124
        %v935 = vpop.permute.xlu0 %934
        %936 = vrot.lane.b32.xlu0 %v903, 124
        %v937 = vpop.permute.xlu0 %936
        %938 = vrot.lane.b32.xlu0 %v904, 124
        %v939 = vpop.permute.xlu0 %938
        %940 = vrot.lane.b32.xlu0 %v905, 124
        %v941 = vpop.permute.xlu0 %940
        %942 = vrot.lane.b32.xlu0 %v906, 124
        %v943 = vpop.permute.xlu0 %942
        %944 = vrot.lane.b32.xlu0 %v907, 124
        %v945 = vpop.permute.xlu0 %944
        %946 = vrot.lane.b32.xlu0 %v908, 124
        %v947 = vpop.permute.xlu0 %946
        %948 = vrot.lane.b32.xlu0 %v909, 124
        %v949 = vpop.permute.xlu0 %948
        %950 = vrot.lane.b32.xlu0 %v910, 124
        %v951 = vpop.permute.xlu0 %950
        %952 = vrot.lane.b32.xlu0 %v911, 124
        %v953 = vpop.permute.xlu0 %952
        %954 = vrot.lane.b32.xlu0 %v912, 124
        %v955 = vpop.permute.xlu0 %954
        %956 = vrot.lane.b32.xlu0 %v913, 124
        %v957 = vpop.permute.xlu0 %956
        %958 = vrot.lane.b32.xlu0 %v914, 124
        %v959 = vpop.permute.xlu0 %958
        %960 = vrot.lane.b32.xlu0 %v915, 124
        %v961 = vpop.permute.xlu0 %960
        %962 = vrot.lane.b32.xlu0 %v916, 124
        %v963 = vpop.permute.xlu0 %962
        %964 = vrot.lane.b32.xlu0 %v917, 124
        %v965 = vpop.permute.xlu0 %964
        %vm966 = vcmask 1014784
        %v967 = vsel %vm966, %v935, %v937
        %v968 = vsel %vm966, %v939, %v941
        %v969 = vsel %vm966, %v943, %v945
        %v970 = vsel %vm966, %v947, %v949
        %v971 = vsel %vm966, %v951, %v953
        %v972 = vsel %vm966, %v955, %v957
        %v973 = vsel %vm966, %v959, %v961
        %v974 = vsel %vm966, %v963, %v965
        %v983 = vadd.f32 %v862, %v967
        %v984 = vadd.f32 %v863, %v968
        %v985 = vadd.f32 %v864, %v969
        %v986 = vadd.f32 %v865, %v970
        %v987 = vadd.f32 %v866, %v971
        %v988 = vadd.f32 %v867, %v972
        %v989 = vadd.f32 %v868, %v973
        %v990 = vadd.f32 %v869, %v974
        %991 = vset.pattern.permute.xlu0 5
        %992 = vperm.xlu0 %991, %v443
        %v993 = vpop.permute.xlu0 %992
        %995 = vset.pattern.permute.xlu0 5
        %996 = vperm.xlu0 %995, %v444
        %v997 = vpop.permute.xlu0 %996
        %999 = vset.pattern.permute.xlu0 5
        %1000 = vperm.xlu0 %999, %v445
        %v1001 = vpop.permute.xlu0 %1000
        %1003 = vset.pattern.permute.xlu0 5
        %1004 = vperm.xlu0 %1003, %v446
        %v1005 = vpop.permute.xlu0 %1004
        %1007 = vset.pattern.permute.xlu0 5
        %1008 = vperm.xlu0 %1007, %v447
        %v1009 = vpop.permute.xlu0 %1008
        %1011 = vset.pattern.permute.xlu0 5
        %1012 = vperm.xlu0 %1011, %v448
        %v1013 = vpop.permute.xlu0 %1012
        %1015 = vset.pattern.permute.xlu0 5
        %1016 = vperm.xlu0 %1015, %v449
        %v1017 = vpop.permute.xlu0 %1016
        %1019 = vset.pattern.permute.xlu0 5
        %1020 = vperm.xlu0 %1019, %v450
        %v1021 = vpop.permute.xlu0 %1020
        %v1023 = vmul.f32 %v427, %v993
        %v1024 = vmul.f32 %v428, %v993
        %v1025 = vmul.f32 %v429, %v997
        %v1026 = vmul.f32 %v430, %v997
        %v1027 = vmul.f32 %v431, %v1001
        %v1028 = vmul.f32 %v432, %v1001
        %v1029 = vmul.f32 %v433, %v1005
        %v1030 = vmul.f32 %v434, %v1005
        %v1031 = vmul.f32 %v435, %v1009
        %v1032 = vmul.f32 %v436, %v1009
        %v1033 = vmul.f32 %v437, %v1013
        %v1034 = vmul.f32 %v438, %v1013
        %v1035 = vmul.f32 %v439, %v1017
        %v1036 = vmul.f32 %v440, %v1017
        %v1037 = vmul.f32 %v441, %v1021
        %v1038 = vmul.f32 %v442, %v1021
        %1055 = vrot.lane.b32.xlu0 %v1023, 123
        %v1056 = vpop.permute.xlu0 %1055
        %1057 = vrot.lane.b32.xlu0 %v1024, 123
        %v1058 = vpop.permute.xlu0 %1057
        %1059 = vrot.lane.b32.xlu0 %v1025, 123
        %v1060 = vpop.permute.xlu0 %1059
        %1061 = vrot.lane.b32.xlu0 %v1026, 123
        %v1062 = vpop.permute.xlu0 %1061
        %1063 = vrot.lane.b32.xlu0 %v1027, 123
        %v1064 = vpop.permute.xlu0 %1063
        %1065 = vrot.lane.b32.xlu0 %v1028, 123
        %v1066 = vpop.permute.xlu0 %1065
        %1067 = vrot.lane.b32.xlu0 %v1029, 123
        %v1068 = vpop.permute.xlu0 %1067
        %1069 = vrot.lane.b32.xlu0 %v1030, 123
        %v1070 = vpop.permute.xlu0 %1069
        %1071 = vrot.lane.b32.xlu0 %v1031, 123
        %v1072 = vpop.permute.xlu0 %1071
        %1073 = vrot.lane.b32.xlu0 %v1032, 123
        %v1074 = vpop.permute.xlu0 %1073
        %1075 = vrot.lane.b32.xlu0 %v1033, 123
        %v1076 = vpop.permute.xlu0 %1075
        %1077 = vrot.lane.b32.xlu0 %v1034, 123
        %v1078 = vpop.permute.xlu0 %1077
        %1079 = vrot.lane.b32.xlu0 %v1035, 123
        %v1080 = vpop.permute.xlu0 %1079
        %1081 = vrot.lane.b32.xlu0 %v1036, 123
        %v1082 = vpop.permute.xlu0 %1081
        %1083 = vrot.lane.b32.xlu0 %v1037, 123
        %v1084 = vpop.permute.xlu0 %1083
        %1085 = vrot.lane.b32.xlu0 %v1038, 123
        %v1086 = vpop.permute.xlu0 %1085
        %vm1087 = vcmask 1006592
        %v1088 = vsel %vm1087, %v1056, %v1058
        %v1089 = vsel %vm1087, %v1060, %v1062
        %v1090 = vsel %vm1087, %v1064, %v1066
        %v1091 = vsel %vm1087, %v1068, %v1070
        %v1092 = vsel %vm1087, %v1072, %v1074
        %v1093 = vsel %vm1087, %v1076, %v1078
        %v1094 = vsel %vm1087, %v1080, %v1082
        %v1095 = vsel %vm1087, %v1084, %v1086
        %v1104 = vadd.f32 %v983, %v1088
        %v1105 = vadd.f32 %v984, %v1089
        %v1106 = vadd.f32 %v985, %v1090
        %v1107 = vadd.f32 %v986, %v1091
        %v1108 = vadd.f32 %v987, %v1092
        %v1109 = vadd.f32 %v988, %v1093
        %v1110 = vadd.f32 %v989, %v1094
        %v1111 = vadd.f32 %v990, %v1095
        %1112 = vset.pattern.permute.xlu0 6
        %1113 = vperm.xlu0 %1112, %v443
        %v1114 = vpop.permute.xlu0 %1113
        %1116 = vset.pattern.permute.xlu0 6
        %1117 = vperm.xlu0 %1116, %v444
        %v1118 = vpop.permute.xlu0 %1117
        %1120 = vset.pattern.permute.xlu0 6
        %1121 = vperm.xlu0 %1120, %v445
        %v1122 = vpop.permute.xlu0 %1121
        %1124 = vset.pattern.permute.xlu0 6
        %1125 = vperm.xlu0 %1124, %v446
        %v1126 = vpop.permute.xlu0 %1125
        %1128 = vset.pattern.permute.xlu0 6
        %1129 = vperm.xlu0 %1128, %v447
        %v1130 = vpop.permute.xlu0 %1129
        %1132 = vset.pattern.permute.xlu0 6
        %1133 = vperm.xlu0 %1132, %v448
        %v1134 = vpop.permute.xlu0 %1133
        %1136 = vset.pattern.permute.xlu0 6
        %1137 = vperm.xlu0 %1136, %v449
        %v1138 = vpop.permute.xlu0 %1137
        %1140 = vset.pattern.permute.xlu0 6
        %1141 = vperm.xlu0 %1140, %v450
        %v1142 = vpop.permute.xlu0 %1141
        %v1144 = vmul.f32 %v427, %v1114
        %v1145 = vmul.f32 %v428, %v1114
        %v1146 = vmul.f32 %v429, %v1118
        %v1147 = vmul.f32 %v430, %v1118
        %v1148 = vmul.f32 %v431, %v1122
        %v1149 = vmul.f32 %v432, %v1122
        %v1150 = vmul.f32 %v433, %v1126
        %v1151 = vmul.f32 %v434, %v1126
        %v1152 = vmul.f32 %v435, %v1130
        %v1153 = vmul.f32 %v436, %v1130
        %v1154 = vmul.f32 %v437, %v1134
        %v1155 = vmul.f32 %v438, %v1134
        %v1156 = vmul.f32 %v439, %v1138
        %v1157 = vmul.f32 %v440, %v1138
        %v1158 = vmul.f32 %v441, %v1142
        %v1159 = vmul.f32 %v442, %v1142
        %1176 = vrot.lane.b32.xlu0 %v1144, 122
        %v1177 = vpop.permute.xlu0 %1176
        %1178 = vrot.lane.b32.xlu0 %v1145, 122
        %v1179 = vpop.permute.xlu0 %1178
        %1180 = vrot.lane.b32.xlu0 %v1146, 122
        %v1181 = vpop.permute.xlu0 %1180
        %1182 = vrot.lane.b32.xlu0 %v1147, 122
        %v1183 = vpop.permute.xlu0 %1182
        %1184 = vrot.lane.b32.xlu0 %v1148, 122
        %v1185 = vpop.permute.xlu0 %1184
        %1186 = vrot.lane.b32.xlu0 %v1149, 122
        %v1187 = vpop.permute.xlu0 %1186
        %1188 = vrot.lane.b32.xlu0 %v1150, 122
        %v1189 = vpop.permute.xlu0 %1188
        %1190 = vrot.lane.b32.xlu0 %v1151, 122
        %v1191 = vpop.permute.xlu0 %1190
        %1192 = vrot.lane.b32.xlu0 %v1152, 122
        %v1193 = vpop.permute.xlu0 %1192
        %1194 = vrot.lane.b32.xlu0 %v1153, 122
        %v1195 = vpop.permute.xlu0 %1194
        %1196 = vrot.lane.b32.xlu0 %v1154, 122
        %v1197 = vpop.permute.xlu0 %1196
        %1198 = vrot.lane.b32.xlu0 %v1155, 122
        %v1199 = vpop.permute.xlu0 %1198
        %1200 = vrot.lane.b32.xlu0 %v1156, 122
        %v1201 = vpop.permute.xlu0 %1200
        %1202 = vrot.lane.b32.xlu0 %v1157, 122
        %v1203 = vpop.permute.xlu0 %1202
        %1204 = vrot.lane.b32.xlu0 %v1158, 122
        %v1205 = vpop.permute.xlu0 %1204
        %1206 = vrot.lane.b32.xlu0 %v1159, 122
        %v1207 = vpop.permute.xlu0 %1206
        %vm1208 = vcmask 998400
        %v1209 = vsel %vm1208, %v1177, %v1179
        %v1210 = vsel %vm1208, %v1181, %v1183
        %v1211 = vsel %vm1208, %v1185, %v1187
        %v1212 = vsel %vm1208, %v1189, %v1191
        %v1213 = vsel %vm1208, %v1193, %v1195
        %v1214 = vsel %vm1208, %v1197, %v1199
        %v1215 = vsel %vm1208, %v1201, %v1203
        %v1216 = vsel %vm1208, %v1205, %v1207
        %v1225 = vadd.f32 %v1104, %v1209
        %v1226 = vadd.f32 %v1105, %v1210
        %v1227 = vadd.f32 %v1106, %v1211
        %v1228 = vadd.f32 %v1107, %v1212
        %v1229 = vadd.f32 %v1108, %v1213
        %v1230 = vadd.f32 %v1109, %v1214
        %v1231 = vadd.f32 %v1110, %v1215
        %v1232 = vadd.f32 %v1111, %v1216
        %v1233 = vld [vmem:[%s2] sm:$0xff]
        %v1234 = vld [vmem:[%s2 + $0x8] sm:$0xff]
        %v1235 = vld [vmem:[%s2 + $0x10] sm:$0xff]
        %v1236 = vld [vmem:[%s2 + $0x18] sm:$0xff]
        %v1237 = vld [vmem:[%s2 + $0x20] sm:$0xff]
        %v1238 = vld [vmem:[%s2 + $0x28] sm:$0xff]
        %v1239 = vld [vmem:[%s2 + $0x30] sm:$0xff]
        %v1240 = vld [vmem:[%s2 + $0x38] sm:$0xff]
        %1242 = vset.pattern.permute.xlu0 0
        %1243 = vperm.xlu0 %1242, %v1233
        %v1244 = vpop.permute.xlu0 %1243
        %1247 = vset.pattern.permute.xlu0 0
        %1248 = vperm.xlu0 %1247, %v1234
        %v1249 = vpop.permute.xlu0 %1248
        %1252 = vset.pattern.permute.xlu0 0
        %1253 = vperm.xlu0 %1252, %v1235
        %v1254 = vpop.permute.xlu0 %1253
        %1257 = vset.pattern.permute.xlu0 0
        %1258 = vperm.xlu0 %1257, %v1236
        %v1259 = vpop.permute.xlu0 %1258
        %1262 = vset.pattern.permute.xlu0 0
        %1263 = vperm.xlu0 %1262, %v1237
        %v1264 = vpop.permute.xlu0 %1263
        %1267 = vset.pattern.permute.xlu0 0
        %1268 = vperm.xlu0 %1267, %v1238
        %v1269 = vpop.permute.xlu0 %1268
        %1272 = vset.pattern.permute.xlu0 0
        %1273 = vperm.xlu0 %1272, %v1239
        %v1274 = vpop.permute.xlu0 %1273
        %1277 = vset.pattern.permute.xlu0 0
        %1278 = vperm.xlu0 %1277, %v1240
        %v1279 = vpop.permute.xlu0 %1278
        %v1281 = vadd.f32 %v1225, %v1244
        %v1282 = vadd.f32 %v1226, %v1249
        %v1283 = vadd.f32 %v1227, %v1254
        %v1284 = vadd.f32 %v1228, %v1259
        %v1285 = vadd.f32 %v1229, %v1264
        %v1286 = vadd.f32 %v1230, %v1269
        %v1287 = vadd.f32 %v1231, %v1274
        %v1288 = vadd.f32 %v1232, %v1279
        %v1289 = vadd.f32 %v1281, %v1282
        %v1290 = vadd.f32 %v1289, %v1283
        %v1291 = vadd.f32 %v1290, %v1284
        %v1292 = vadd.f32 %v1291, %v1285
        %v1293 = vadd.f32 %v1292, %v1286
        %v1294 = vadd.f32 %v1293, %v1287
        %v1295 = vadd.f32 %v1294, %v1288
        %v1296 = vrot.slane %v1295, 4
        %v1297 = vadd.f32 %v1295, %v1296
        %v1298 = vrot.slane %v1297, 2
        %v1299 = vadd.f32 %v1297, %v1298
        %v1300 = vrot.slane %v1299, 1
        %v1301 = vadd.f32 %v1299, %v1300
        %v1302 = vrcp.pop 64.0
        %v1303 = vmul.f32 %v1301, %v1302
        %v1304 = vsub.f32 %v1281, %v1303
        %v1305 = vsub.f32 %v1282, %v1303
        %v1306 = vsub.f32 %v1283, %v1303
        %v1307 = vsub.f32 %v1284, %v1303
        %v1308 = vsub.f32 %v1285, %v1303
        %v1309 = vsub.f32 %v1286, %v1303
        %v1310 = vsub.f32 %v1287, %v1303
        %v1311 = vsub.f32 %v1288, %v1303
        %v1312 = vmul.f32 %v1304, %v1304
        %v1313 = vmul.f32 %v1305, %v1305
        %v1314 = vmul.f32 %v1306, %v1306
        %v1315 = vmul.f32 %v1307, %v1307
        %v1316 = vmul.f32 %v1308, %v1308
        %v1317 = vmul.f32 %v1309, %v1309
        %v1318 = vmul.f32 %v1310, %v1310
        %v1319 = vmul.f32 %v1311, %v1311
        %v1320 = vadd.f32 %v1312, %v1313
        %v1321 = vadd.f32 %v1320, %v1314
        %v1322 = vadd.f32 %v1321, %v1315
        %v1323 = vadd.f32 %v1322, %v1316
        %v1324 = vadd.f32 %v1323, %v1317
        %v1325 = vadd.f32 %v1324, %v1318
        %v1326 = vadd.f32 %v1325, %v1319
        %v1327 = vrot.slane %v1326, 4
        %v1328 = vadd.f32 %v1326, %v1327
        %v1329 = vrot.slane %v1328, 2
        %v1330 = vadd.f32 %v1328, %v1329
        %v1331 = vrot.slane %v1330, 1
        %v1332 = vadd.f32 %v1330, %v1331
        %v1333 = vmul.f32 %v1332, %v1302
        %v1334 = vadd.f32 %v1333, 1e-06
        %v1335 = vrsqrt.pop %v1334
        %v1336 = vmul.f32 %v1304, %v1335
        %v1337 = vmul.f32 %v1305, %v1335
        %v1338 = vmul.f32 %v1306, %v1335
        %v1339 = vmul.f32 %v1307, %v1335
        %v1340 = vmul.f32 %v1308, %v1335
        %v1341 = vmul.f32 %v1309, %v1335
        %v1342 = vmul.f32 %v1310, %v1335
        %v1343 = vmul.f32 %v1311, %v1335
        %v1344 = vld [vmem:[%s420] sm:$0xff]
        %v1345 = vld [vmem:[%s420 + $0x8] sm:$0xff]
        %v1346 = vld [vmem:[%s420 + $0x10] sm:$0xff]
        %v1347 = vld [vmem:[%s420 + $0x18] sm:$0xff]
        %v1348 = vld [vmem:[%s420 + $0x20] sm:$0xff]
        %v1349 = vld [vmem:[%s420 + $0x28] sm:$0xff]
        %v1350 = vld [vmem:[%s420 + $0x30] sm:$0xff]
        %v1351 = vld [vmem:[%s420 + $0x38] sm:$0xff]
        %1353 = vset.pattern.permute.xlu0 0
        %1354 = vperm.xlu0 %1353, %v1344
        %v1355 = vpop.permute.xlu0 %1354
        %1358 = vset.pattern.permute.xlu0 0
        %1359 = vperm.xlu0 %1358, %v1345
        %v1360 = vpop.permute.xlu0 %1359
        %1363 = vset.pattern.permute.xlu0 0
        %1364 = vperm.xlu0 %1363, %v1346
        %v1365 = vpop.permute.xlu0 %1364
        %1368 = vset.pattern.permute.xlu0 0
        %1369 = vperm.xlu0 %1368, %v1347
        %v1370 = vpop.permute.xlu0 %1369
        %1373 = vset.pattern.permute.xlu0 0
        %1374 = vperm.xlu0 %1373, %v1348
        %v1375 = vpop.permute.xlu0 %1374
        %1378 = vset.pattern.permute.xlu0 0
        %1379 = vperm.xlu0 %1378, %v1349
        %v1380 = vpop.permute.xlu0 %1379
        %1383 = vset.pattern.permute.xlu0 0
        %1384 = vperm.xlu0 %1383, %v1350
        %v1385 = vpop.permute.xlu0 %1384
        %1388 = vset.pattern.permute.xlu0 0
        %1389 = vperm.xlu0 %1388, %v1351
        %v1390 = vpop.permute.xlu0 %1389
        %v1392 = vmul.f32 %v1336, %v1355
        %v1393 = vmul.f32 %v1337, %v1360
        %v1394 = vmul.f32 %v1338, %v1365
        %v1395 = vmul.f32 %v1339, %v1370
        %v1396 = vmul.f32 %v1340, %v1375
        %v1397 = vmul.f32 %v1341, %v1380
        %v1398 = vmul.f32 %v1342, %v1385
        %v1399 = vmul.f32 %v1343, %v1390
        %v1400 = vld [vmem:[%s425] sm:$0xff]
        %v1401 = vld [vmem:[%s425 + $0x8] sm:$0xff]
        %v1402 = vld [vmem:[%s425 + $0x10] sm:$0xff]
        %v1403 = vld [vmem:[%s425 + $0x18] sm:$0xff]
        %v1404 = vld [vmem:[%s425 + $0x20] sm:$0xff]
        %v1405 = vld [vmem:[%s425 + $0x28] sm:$0xff]
        %v1406 = vld [vmem:[%s425 + $0x30] sm:$0xff]
        %v1407 = vld [vmem:[%s425 + $0x38] sm:$0xff]
        %1409 = vset.pattern.permute.xlu0 0
        %1410 = vperm.xlu0 %1409, %v1400
        %v1411 = vpop.permute.xlu0 %1410
        %1414 = vset.pattern.permute.xlu0 0
        %1415 = vperm.xlu0 %1414, %v1401
        %v1416 = vpop.permute.xlu0 %1415
        %1419 = vset.pattern.permute.xlu0 0
        %1420 = vperm.xlu0 %1419, %v1402
        %v1421 = vpop.permute.xlu0 %1420
        %1424 = vset.pattern.permute.xlu0 0
        %1425 = vperm.xlu0 %1424, %v1403
        %v1426 = vpop.permute.xlu0 %1425
        %1429 = vset.pattern.permute.xlu0 0
        %1430 = vperm.xlu0 %1429, %v1404
        %v1431 = vpop.permute.xlu0 %1430
        %1434 = vset.pattern.permute.xlu0 0
        %1435 = vperm.xlu0 %1434, %v1405
        %v1436 = vpop.permute.xlu0 %1435
        %1439 = vset.pattern.permute.xlu0 0
        %1440 = vperm.xlu0 %1439, %v1406
        %v1441 = vpop.permute.xlu0 %1440
        %1444 = vset.pattern.permute.xlu0 0
        %1445 = vperm.xlu0 %1444, %v1407
        %v1446 = vpop.permute.xlu0 %1445
        %v1448 = vadd.f32 %v1392, %v1411
        %v1449 = vadd.f32 %v1393, %v1416
        %v1450 = vadd.f32 %v1394, %v1421
        %v1451 = vadd.f32 %v1395, %v1426
        %v1452 = vadd.f32 %v1396, %v1431
        %v1453 = vadd.f32 %v1397, %v1436
        %v1454 = vadd.f32 %v1398, %v1441
        %v1455 = vadd.f32 %v1399, %v1446
        %v1456 = vld [vmem:[%s5] sm:$0xff]
        %v1457 = vld [vmem:[%s5 + $0x8] sm:$0xff]
        %v1458 = vld [vmem:[%s5 + $0x10] sm:$0xff]
        %v1459 = vld [vmem:[%s5 + $0x18] sm:$0xff]
        %v1460 = vld [vmem:[%s5 + $0x20] sm:$0xff]
        %v1461 = vld [vmem:[%s5 + $0x28] sm:$0xff]
        %v1462 = vld [vmem:[%s5 + $0x30] sm:$0xff]
        %v1463 = vld [vmem:[%s5 + $0x38] sm:$0xff]
        %v1464 = vld [vmem:[%s5 + $0x40] sm:$0xff]
        %v1465 = vld [vmem:[%s5 + $0x48] sm:$0xff]
        %v1466 = vld [vmem:[%s5 + $0x50] sm:$0xff]
        %v1467 = vld [vmem:[%s5 + $0x58] sm:$0xff]
        %v1468 = vld [vmem:[%s5 + $0x60] sm:$0xff]
        %v1469 = vld [vmem:[%s5 + $0x68] sm:$0xff]
        %v1470 = vld [vmem:[%s5 + $0x70] sm:$0xff]
        %v1471 = vld [vmem:[%s5 + $0x78] sm:$0xff]
        %v1472 = vpack.c.bf16 %v1457, %v1456
        %v1473 = vpack.c.bf16 %v1459, %v1458
        %v1474 = vpack.c.bf16 %v1461, %v1460
        %v1475 = vpack.c.bf16 %v1463, %v1462
        %v1476 = vpack.c.bf16 %v1465, %v1464
        %v1477 = vpack.c.bf16 %v1467, %v1466
        %v1478 = vpack.c.bf16 %v1469, %v1468
        %v1479 = vpack.c.bf16 %v1471, %v1470
        %v1480 = vpack.c.bf16 %v1449, %v1448
        %v1481 = vpack.c.bf16 %v1451, %v1450
        %v1482 = vpack.c.bf16 %v1453, %v1452
        %v1483 = vpack.c.bf16 %v1455, %v1454
        %v1484 = vld [vmem:[%s6] sm:$0xff]
        %v1485 = vld [vmem:[%s6 + $0x8] sm:$0xff]
        %v1486 = vld [vmem:[%s6 + $0x10] sm:$0xff]
        %v1487 = vld [vmem:[%s6 + $0x18] sm:$0xff]
        %v1488 = vld [vmem:[%s6 + $0x20] sm:$0xff]
        %v1489 = vld [vmem:[%s6 + $0x28] sm:$0xff]
        %v1490 = vld [vmem:[%s6 + $0x30] sm:$0xff]
        %v1491 = vld [vmem:[%s6 + $0x38] sm:$0xff]
        %v1492 = vld [vmem:[%s6 + $0x40] sm:$0xff]
        %v1493 = vld [vmem:[%s6 + $0x48] sm:$0xff]
        %v1494 = vld [vmem:[%s6 + $0x50] sm:$0xff]
        %v1495 = vld [vmem:[%s6 + $0x58] sm:$0xff]
        %v1496 = vld [vmem:[%s6 + $0x60] sm:$0xff]
        %v1497 = vld [vmem:[%s6 + $0x68] sm:$0xff]
        %v1498 = vld [vmem:[%s6 + $0x70] sm:$0xff]
        %v1499 = vld [vmem:[%s6 + $0x78] sm:$0xff]
        %1501 = vset.pattern.permute.xlu0 0
        %1502 = vperm.xlu0 %1501, %v1484
        %v1503 = vpop.permute.xlu0 %1502
        %1506 = vset.pattern.permute.xlu0 0
        %1507 = vperm.xlu0 %1506, %v1485
        %v1508 = vpop.permute.xlu0 %1507
        %1511 = vset.pattern.permute.xlu0 0
        %1512 = vperm.xlu0 %1511, %v1486
        %v1513 = vpop.permute.xlu0 %1512
        %1516 = vset.pattern.permute.xlu0 0
        %1517 = vperm.xlu0 %1516, %v1487
        %v1518 = vpop.permute.xlu0 %1517
        %1521 = vset.pattern.permute.xlu0 0
        %1522 = vperm.xlu0 %1521, %v1488
        %v1523 = vpop.permute.xlu0 %1522
        %1526 = vset.pattern.permute.xlu0 0
        %1527 = vperm.xlu0 %1526, %v1489
        %v1528 = vpop.permute.xlu0 %1527
        %1531 = vset.pattern.permute.xlu0 0
        %1532 = vperm.xlu0 %1531, %v1490
        %v1533 = vpop.permute.xlu0 %1532
        %1536 = vset.pattern.permute.xlu0 0
        %1537 = vperm.xlu0 %1536, %v1491
        %v1538 = vpop.permute.xlu0 %1537
        %1541 = vset.pattern.permute.xlu0 0
        %1542 = vperm.xlu0 %1541, %v1492
        %v1543 = vpop.permute.xlu0 %1542
        %1546 = vset.pattern.permute.xlu0 0
        %1547 = vperm.xlu0 %1546, %v1493
        %v1548 = vpop.permute.xlu0 %1547
        %1551 = vset.pattern.permute.xlu0 0
        %1552 = vperm.xlu0 %1551, %v1494
        %v1553 = vpop.permute.xlu0 %1552
        %1556 = vset.pattern.permute.xlu0 0
        %1557 = vperm.xlu0 %1556, %v1495
        %v1558 = vpop.permute.xlu0 %1557
        %1561 = vset.pattern.permute.xlu0 0
        %1562 = vperm.xlu0 %1561, %v1496
        %v1563 = vpop.permute.xlu0 %1562
        %1566 = vset.pattern.permute.xlu0 0
        %1567 = vperm.xlu0 %1566, %v1497
        %v1568 = vpop.permute.xlu0 %1567
        %1571 = vset.pattern.permute.xlu0 0
        %1572 = vperm.xlu0 %1571, %v1498
        %v1573 = vpop.permute.xlu0 %1572
        %1576 = vset.pattern.permute.xlu0 0
        %1577 = vperm.xlu0 %1576, %v1499
        %v1578 = vpop.permute.xlu0 %1577
        %vm1580 = vcmask 523264
        %v1582 = vsel %vm1580, %v1472, 0
        %v1585 = vsel %vm1580, %v1473, 0
        %v1588 = vsel %vm1580, %v1474, 0
        %v1591 = vsel %vm1580, %v1475, 0
        %v1594 = vsel %vm1580, %v1476, 0
        %v1597 = vsel %vm1580, %v1477, 0
        %v1600 = vsel %vm1580, %v1478, 0
        %v1603 = vsel %vm1580, %v1479, 0
        %1605 = vmatprep.subr.bf16.mxu0 0
        %1606 = vmatpush1.bf16.msra.mxu0 0
        %1607 = vmatprep.subr.bf16.mxu0 0
        %1608 = vmatpush1.bf16.msra.mxu0 0
        %1609 = vmatprep.subr.bf16.mxu0 0
        %1610 = vmatpush1.bf16.msra.mxu0 0
        %1611 = vmatprep.subr.bf16.mxu0 0
        %1612 = vmatpush1.bf16.msra.mxu0 0
        %1613 = vmatprep.subr.bf16.mxu0 0
        %1614 = vmatpush1.bf16.msra.mxu0 %v1483
        %1615 = vmatprep.subr.bf16.mxu0 0
        %1616 = vmatpush1.bf16.msra.mxu0 %v1482
        %1617 = vmatprep.subr.bf16.mxu0 0
        %1618 = vmatpush1.bf16.msra.mxu0 %v1481
        %1619 = vmatprep.subr.bf16.mxu0 0
        %1620 = vmatpush1.bf16.msra.mxu0 %v1480
        %1621 = vmatprep.subr.bf16.mxu0 0
        %1622 = vmatpush2.bf16.msra.mxu0 0
        %1623 = vmatprep.subr.bf16.mxu0 0
        %1624 = vmatpush2.bf16.msra.mxu0 0
        %1625 = vmatprep.subr.bf16.mxu0 0
        %1626 = vmatpush2.bf16.msra.mxu0 0
        %1627 = vmatprep.subr.bf16.mxu0 0
        %1628 = vmatpush2.bf16.msra.mxu0 0
        %1629 = vmatprep.subr.bf16.mxu0 0
        %1630 = vmatpush2.bf16.msra.mxu0 0
        %1631 = vmatprep.subr.bf16.mxu0 0
        %1632 = vmatpush2.bf16.msra.mxu0 0
        %1633 = vmatprep.subr.bf16.mxu0 0
        %1634 = vmatpush2.bf16.msra.mxu0 0
        %1635 = vmatprep.subr.bf16.mxu0 0
        %1636 = vmatpush2.bf16.msra.mxu0 0
        %1637 = vmatprep.mubr.bf16.mxu0 0
        %1638 = vmatmul.mubr.bf16.gmra.mxu0 %v1582
        %v1639 = vpop.f32.mrf.mxu0
        %v1640 = vadd.f32 %v1503, %v1639
        %v1641 = vpop.f32.mrf.mxu0
        %v1642 = vpop.f32.mrf.mxu0
        %v1643 = vadd.f32 %v1508, %v1642
        %v1644 = vpop.f32.mrf.mxu0
        %1645 = vmatprep.mubr.bf16.mxu0 0
        %1646 = vmatmul.mubr.bf16.gmra.mxu0 %v1585
        %v1647 = vpop.f32.mrf.mxu0
        %v1648 = vadd.f32 %v1513, %v1647
        %v1649 = vpop.f32.mrf.mxu0
        %v1650 = vpop.f32.mrf.mxu0
        %v1651 = vadd.f32 %v1518, %v1650
        %v1652 = vpop.f32.mrf.mxu0
        %1653 = vmatprep.mubr.bf16.mxu0 0
        %1654 = vmatmul.mubr.bf16.gmra.mxu0 %v1588
        %v1655 = vpop.f32.mrf.mxu0
        %v1656 = vadd.f32 %v1523, %v1655
        %v1657 = vpop.f32.mrf.mxu0
        %v1658 = vpop.f32.mrf.mxu0
        %v1659 = vadd.f32 %v1528, %v1658
        %v1660 = vpop.f32.mrf.mxu0
        %1661 = vmatprep.mubr.bf16.mxu0 0
        %1662 = vmatmul.mubr.bf16.gmra.mxu0 %v1591
        %v1663 = vpop.f32.mrf.mxu0
        %v1664 = vadd.f32 %v1533, %v1663
        %v1665 = vpop.f32.mrf.mxu0
        %v1666 = vpop.f32.mrf.mxu0
        %v1667 = vadd.f32 %v1538, %v1666
        %v1668 = vpop.f32.mrf.mxu0
        %1669 = vmatprep.mubr.bf16.mxu0 0
        %1670 = vmatmul.mubr.bf16.gmra.mxu0 %v1594
        %v1671 = vpop.f32.mrf.mxu0
        %v1672 = vadd.f32 %v1543, %v1671
        %v1673 = vpop.f32.mrf.mxu0
        %v1674 = vpop.f32.mrf.mxu0
        %v1675 = vadd.f32 %v1548, %v1674
        %v1676 = vpop.f32.mrf.mxu0
        %1677 = vmatprep.mubr.bf16.mxu0 0
        %1678 = vmatmul.mubr.bf16.gmra.mxu0 %v1597
        %v1679 = vpop.f32.mrf.mxu0
        %v1680 = vadd.f32 %v1553, %v1679
        %v1681 = vpop.f32.mrf.mxu0
        %v1682 = vpop.f32.mrf.mxu0
        %v1683 = vadd.f32 %v1558, %v1682
        %v1684 = vpop.f32.mrf.mxu0
        %1685 = vmatprep.mubr.bf16.mxu0 0
        %1686 = vmatmul.mubr.bf16.gmra.mxu0 %v1600
        %v1687 = vpop.f32.mrf.mxu0
        %v1688 = vadd.f32 %v1563, %v1687
        %v1689 = vpop.f32.mrf.mxu0
        %v1690 = vpop.f32.mrf.mxu0
        %v1691 = vadd.f32 %v1568, %v1690
        %v1692 = vpop.f32.mrf.mxu0
        %1693 = vmatprep.mubr.bf16.mxu0 0
        %1694 = vmatmul.mubr.bf16.gmra.mxu0 %v1603
        %v1695 = vpop.f32.mrf.mxu0
        %v1696 = vadd.f32 %v1573, %v1695
        %v1697 = vpop.f32.mrf.mxu0
        %v1698 = vpop.f32.mrf.mxu0
        %v1699 = vadd.f32 %v1578, %v1698
        %v1700 = vpop.f32.mrf.mxu0
        %1701 = vdwg.mxu0
        %v1702 = vmul.f32 %v1640, 0.5
        %v1703 = vmul.f32 %v1643, 0.5
        %v1704 = vmul.f32 %v1648, 0.5
        %v1705 = vmul.f32 %v1651, 0.5
        %v1706 = vmul.f32 %v1656, 0.5
        %v1707 = vmul.f32 %v1659, 0.5
        %v1708 = vmul.f32 %v1664, 0.5
        %v1709 = vmul.f32 %v1667, 0.5
        %v1710 = vmul.f32 %v1672, 0.5
        %v1711 = vmul.f32 %v1675, 0.5
        %v1712 = vmul.f32 %v1680, 0.5
        %v1713 = vmul.f32 %v1683, 0.5
        %v1714 = vmul.f32 %v1688, 0.5
        %v1715 = vmul.f32 %v1691, 0.5
        %v1716 = vmul.f32 %v1696, 0.5
        %v1717 = vmul.f32 %v1699, 0.5
        %v1718 = vmul.f32 %v1640, 0.70710677
        %v1719 = vmul.f32 %v1643, 0.70710677
        %v1720 = vmul.f32 %v1648, 0.70710677
        %v1721 = vmul.f32 %v1651, 0.70710677
        %v1722 = vmul.f32 %v1656, 0.70710677
        %v1723 = vmul.f32 %v1659, 0.70710677
        %v1724 = vmul.f32 %v1664, 0.70710677
        %v1725 = vmul.f32 %v1667, 0.70710677
        %v1726 = vmul.f32 %v1672, 0.70710677
        %v1727 = vmul.f32 %v1675, 0.70710677
        %v1728 = vmul.f32 %v1680, 0.70710677
        %v1729 = vmul.f32 %v1683, 0.70710677
        %v1730 = vmul.f32 %v1688, 0.70710677
        %v1731 = vmul.f32 %v1691, 0.70710677
        %v1732 = vmul.f32 %v1696, 0.70710677
        %v1733 = vmul.f32 %v1699, 0.70710677
        %v1734 = vand.u32 2147483647, %v1718
        %v1735 = vand.u32 2147483647, %v1719
        %v1736 = vand.u32 2147483647, %v1720
        %v1737 = vand.u32 2147483647, %v1721
        %v1738 = vand.u32 2147483647, %v1722
        %v1739 = vand.u32 2147483647, %v1723
        %v1740 = vand.u32 2147483647, %v1724
        %v1741 = vand.u32 2147483647, %v1725
        %v1742 = vand.u32 2147483647, %v1726
        %v1743 = vand.u32 2147483647, %v1727
        %v1744 = vand.u32 2147483647, %v1728
        %v1745 = vand.u32 2147483647, %v1729
        %v1746 = vand.u32 2147483647, %v1730
        %v1747 = vand.u32 2147483647, %v1731
        %v1748 = vand.u32 2147483647, %v1732
        %v1749 = vand.u32 2147483647, %v1733
        %v1750 = vmul.f32 %v1734, 0.3275911
        %v1751 = vmul.f32 %v1735, 0.3275911
        %v1752 = vmul.f32 %v1736, 0.3275911
        %v1753 = vmul.f32 %v1737, 0.3275911
        %v1754 = vmul.f32 %v1738, 0.3275911
        %v1755 = vmul.f32 %v1739, 0.3275911
        %v1756 = vmul.f32 %v1740, 0.3275911
        %v1757 = vmul.f32 %v1741, 0.3275911
        %v1758 = vmul.f32 %v1742, 0.3275911
        %v1759 = vmul.f32 %v1743, 0.3275911
        %v1760 = vmul.f32 %v1744, 0.3275911
        %v1761 = vmul.f32 %v1745, 0.3275911
        %v1762 = vmul.f32 %v1746, 0.3275911
        %v1763 = vmul.f32 %v1747, 0.3275911
        %v1764 = vmul.f32 %v1748, 0.3275911
        %v1765 = vmul.f32 %v1749, 0.3275911
        %v1766 = vadd.f32 %v1750, 1.0
        %v1767 = vadd.f32 %v1751, 1.0
        %v1768 = vadd.f32 %v1752, 1.0
        %v1769 = vadd.f32 %v1753, 1.0
        %v1770 = vadd.f32 %v1754, 1.0
        %v1771 = vadd.f32 %v1755, 1.0
        %v1772 = vadd.f32 %v1756, 1.0
        %v1773 = vadd.f32 %v1757, 1.0
        %v1774 = vadd.f32 %v1758, 1.0
        %v1775 = vadd.f32 %v1759, 1.0
        %v1776 = vadd.f32 %v1760, 1.0
        %v1777 = vadd.f32 %v1761, 1.0
        %v1778 = vadd.f32 %v1762, 1.0
        %v1779 = vadd.f32 %v1763, 1.0
        %v1780 = vadd.f32 %v1764, 1.0
        %v1781 = vadd.f32 %v1765, 1.0
        %v1782 = vrcp.pop %v1766
        %v1783 = vmul.f32 1.0, %v1782
        %v1784 = vrcp.pop %v1767
        %v1785 = vmul.f32 1.0, %v1784
        %v1786 = vrcp.pop %v1768
        %v1787 = vmul.f32 1.0, %v1786
        %v1788 = vrcp.pop %v1769
        %v1789 = vmul.f32 1.0, %v1788
        %v1790 = vrcp.pop %v1770
        %v1791 = vmul.f32 1.0, %v1790
        %v1792 = vrcp.pop %v1771
        %v1793 = vmul.f32 1.0, %v1792
        %v1794 = vrcp.pop %v1772
        %v1795 = vmul.f32 1.0, %v1794
        %v1796 = vrcp.pop %v1773
        %v1797 = vmul.f32 1.0, %v1796
        %v1798 = vrcp.pop %v1774
        %v1799 = vmul.f32 1.0, %v1798
        %v1800 = vrcp.pop %v1775
        %v1801 = vmul.f32 1.0, %v1800
        %v1802 = vrcp.pop %v1776
        %v1803 = vmul.f32 1.0, %v1802
        %v1804 = vrcp.pop %v1777
        %v1805 = vmul.f32 1.0, %v1804
        %v1806 = vrcp.pop %v1778
        %v1807 = vmul.f32 1.0, %v1806
        %v1808 = vrcp.pop %v1779
        %v1809 = vmul.f32 1.0, %v1808
        %v1810 = vrcp.pop %v1780
        %v1811 = vmul.f32 1.0, %v1810
        %v1812 = vrcp.pop %v1781
        %v1813 = vmul.f32 1.0, %v1812
        %v1814 = vmul.f32 %v1783, 1.0614054
        %v1815 = vmul.f32 %v1785, 1.0614054
        %v1816 = vmul.f32 %v1787, 1.0614054
        %v1817 = vmul.f32 %v1789, 1.0614054
        %v1818 = vmul.f32 %v1791, 1.0614054
        %v1819 = vmul.f32 %v1793, 1.0614054
        %v1820 = vmul.f32 %v1795, 1.0614054
        %v1821 = vmul.f32 %v1797, 1.0614054
        %v1822 = vmul.f32 %v1799, 1.0614054
        %v1823 = vmul.f32 %v1801, 1.0614054
        %v1824 = vmul.f32 %v1803, 1.0614054
        %v1825 = vmul.f32 %v1805, 1.0614054
        %v1826 = vmul.f32 %v1807, 1.0614054
        %v1827 = vmul.f32 %v1809, 1.0614054
        %v1828 = vmul.f32 %v1811, 1.0614054
        %v1829 = vmul.f32 %v1813, 1.0614054
        %v1830 = vadd.f32 %v1814, -1.4531521
        %v1831 = vadd.f32 %v1815, -1.4531521
        %v1832 = vadd.f32 %v1816, -1.4531521
        %v1833 = vadd.f32 %v1817, -1.4531521
        %v1834 = vadd.f32 %v1818, -1.4531521
        %v1835 = vadd.f32 %v1819, -1.4531521
        %v1836 = vadd.f32 %v1820, -1.4531521
        %v1837 = vadd.f32 %v1821, -1.4531521
        %v1838 = vadd.f32 %v1822, -1.4531521
        %v1839 = vadd.f32 %v1823, -1.4531521
        %v1840 = vadd.f32 %v1824, -1.4531521
        %v1841 = vadd.f32 %v1825, -1.4531521
        %v1842 = vadd.f32 %v1826, -1.4531521
        %v1843 = vadd.f32 %v1827, -1.4531521
        %v1844 = vadd.f32 %v1828, -1.4531521
        %v1845 = vadd.f32 %v1829, -1.4531521
        %v1846 = vmul.f32 %v1830, %v1783
        %v1847 = vmul.f32 %v1831, %v1785
        %v1848 = vmul.f32 %v1832, %v1787
        %v1849 = vmul.f32 %v1833, %v1789
        %v1850 = vmul.f32 %v1834, %v1791
        %v1851 = vmul.f32 %v1835, %v1793
        %v1852 = vmul.f32 %v1836, %v1795
        %v1853 = vmul.f32 %v1837, %v1797
        %v1854 = vmul.f32 %v1838, %v1799
        %v1855 = vmul.f32 %v1839, %v1801
        %v1856 = vmul.f32 %v1840, %v1803
        %v1857 = vmul.f32 %v1841, %v1805
        %v1858 = vmul.f32 %v1842, %v1807
        %v1859 = vmul.f32 %v1843, %v1809
        %v1860 = vmul.f32 %v1844, %v1811
        %v1861 = vmul.f32 %v1845, %v1813
        %v1862 = vadd.f32 %v1846, 1.4214138
        %v1863 = vadd.f32 %v1847, 1.4214138
        %v1864 = vadd.f32 %v1848, 1.4214138
        %v1865 = vadd.f32 %v1849, 1.4214138
        %v1866 = vadd.f32 %v1850, 1.4214138
        %v1867 = vadd.f32 %v1851, 1.4214138
        %v1868 = vadd.f32 %v1852, 1.4214138
        %v1869 = vadd.f32 %v1853, 1.4214138
        %v1870 = vadd.f32 %v1854, 1.4214138
        %v1871 = vadd.f32 %v1855, 1.4214138
        %v1872 = vadd.f32 %v1856, 1.4214138
        %v1873 = vadd.f32 %v1857, 1.4214138
        %v1874 = vadd.f32 %v1858, 1.4214138
        %v1875 = vadd.f32 %v1859, 1.4214138
        %v1876 = vadd.f32 %v1860, 1.4214138
        %v1877 = vadd.f32 %v1861, 1.4214138
        %v1878 = vmul.f32 %v1862, %v1783
        %v1879 = vmul.f32 %v1863, %v1785
        %v1880 = vmul.f32 %v1864, %v1787
        %v1881 = vmul.f32 %v1865, %v1789
        %v1882 = vmul.f32 %v1866, %v1791
        %v1883 = vmul.f32 %v1867, %v1793
        %v1884 = vmul.f32 %v1868, %v1795
        %v1885 = vmul.f32 %v1869, %v1797
        %v1886 = vmul.f32 %v1870, %v1799
        %v1887 = vmul.f32 %v1871, %v1801
        %v1888 = vmul.f32 %v1872, %v1803
        %v1889 = vmul.f32 %v1873, %v1805
        %v1890 = vmul.f32 %v1874, %v1807
        %v1891 = vmul.f32 %v1875, %v1809
        %v1892 = vmul.f32 %v1876, %v1811
        %v1893 = vmul.f32 %v1877, %v1813
        %v1894 = vadd.f32 %v1878, -0.28449672
        %v1895 = vadd.f32 %v1879, -0.28449672
        %v1896 = vadd.f32 %v1880, -0.28449672
        %v1897 = vadd.f32 %v1881, -0.28449672
        %v1898 = vadd.f32 %v1882, -0.28449672
        %v1899 = vadd.f32 %v1883, -0.28449672
        %v1900 = vadd.f32 %v1884, -0.28449672
        %v1901 = vadd.f32 %v1885, -0.28449672
        %v1902 = vadd.f32 %v1886, -0.28449672
        %v1903 = vadd.f32 %v1887, -0.28449672
        %v1904 = vadd.f32 %v1888, -0.28449672
        %v1905 = vadd.f32 %v1889, -0.28449672
        %v1906 = vadd.f32 %v1890, -0.28449672
        %v1907 = vadd.f32 %v1891, -0.28449672
        %v1908 = vadd.f32 %v1892, -0.28449672
        %v1909 = vadd.f32 %v1893, -0.28449672
        %v1910 = vmul.f32 %v1894, %v1783
        %v1911 = vmul.f32 %v1895, %v1785
        %v1912 = vmul.f32 %v1896, %v1787
        %v1913 = vmul.f32 %v1897, %v1789
        %v1914 = vmul.f32 %v1898, %v1791
        %v1915 = vmul.f32 %v1899, %v1793
        %v1916 = vmul.f32 %v1900, %v1795
        %v1917 = vmul.f32 %v1901, %v1797
        %v1918 = vmul.f32 %v1902, %v1799
        %v1919 = vmul.f32 %v1903, %v1801
        %v1920 = vmul.f32 %v1904, %v1803
        %v1921 = vmul.f32 %v1905, %v1805
        %v1922 = vmul.f32 %v1906, %v1807
        %v1923 = vmul.f32 %v1907, %v1809
        %v1924 = vmul.f32 %v1908, %v1811
        %v1925 = vmul.f32 %v1909, %v1813
        %v1926 = vadd.f32 %v1910, 0.2548296
        %v1927 = vadd.f32 %v1911, 0.2548296
        %v1928 = vadd.f32 %v1912, 0.2548296
        %v1929 = vadd.f32 %v1913, 0.2548296
        %v1930 = vadd.f32 %v1914, 0.2548296
        %v1931 = vadd.f32 %v1915, 0.2548296
        %v1932 = vadd.f32 %v1916, 0.2548296
        %v1933 = vadd.f32 %v1917, 0.2548296
        %v1934 = vadd.f32 %v1918, 0.2548296
        %v1935 = vadd.f32 %v1919, 0.2548296
        %v1936 = vadd.f32 %v1920, 0.2548296
        %v1937 = vadd.f32 %v1921, 0.2548296
        %v1938 = vadd.f32 %v1922, 0.2548296
        %v1939 = vadd.f32 %v1923, 0.2548296
        %v1940 = vadd.f32 %v1924, 0.2548296
        %v1941 = vadd.f32 %v1925, 0.2548296
        %v1942 = vmul.f32 %v1926, %v1783
        %v1943 = vmul.f32 %v1927, %v1785
        %v1944 = vmul.f32 %v1928, %v1787
        %v1945 = vmul.f32 %v1929, %v1789
        %v1946 = vmul.f32 %v1930, %v1791
        %v1947 = vmul.f32 %v1931, %v1793
        %v1948 = vmul.f32 %v1932, %v1795
        %v1949 = vmul.f32 %v1933, %v1797
        %v1950 = vmul.f32 %v1934, %v1799
        %v1951 = vmul.f32 %v1935, %v1801
        %v1952 = vmul.f32 %v1936, %v1803
        %v1953 = vmul.f32 %v1937, %v1805
        %v1954 = vmul.f32 %v1938, %v1807
        %v1955 = vmul.f32 %v1939, %v1809
        %v1956 = vmul.f32 %v1940, %v1811
        %v1957 = vmul.f32 %v1941, %v1813
        %v1958 = vsub.f32 0.0, %v1734
        %v1959 = vsub.f32 0.0, %v1735
        %v1960 = vsub.f32 0.0, %v1736
        %v1961 = vsub.f32 0.0, %v1737
        %v1962 = vsub.f32 0.0, %v1738
        %v1963 = vsub.f32 0.0, %v1739
        %v1964 = vsub.f32 0.0, %v1740
        %v1965 = vsub.f32 0.0, %v1741
        %v1966 = vsub.f32 0.0, %v1742
        %v1967 = vsub.f32 0.0, %v1743
        %v1968 = vsub.f32 0.0, %v1744
        %v1969 = vsub.f32 0.0, %v1745
        %v1970 = vsub.f32 0.0, %v1746
        %v1971 = vsub.f32 0.0, %v1747
        %v1972 = vsub.f32 0.0, %v1748
        %v1973 = vsub.f32 0.0, %v1749
        %v1974 = vmul.f32 %v1958, %v1734
        %v1975 = vmul.f32 %v1959, %v1735
        %v1976 = vmul.f32 %v1960, %v1736
        %v1977 = vmul.f32 %v1961, %v1737
        %v1978 = vmul.f32 %v1962, %v1738
        %v1979 = vmul.f32 %v1963, %v1739
        %v1980 = vmul.f32 %v1964, %v1740
        %v1981 = vmul.f32 %v1965, %v1741
        %v1982 = vmul.f32 %v1966, %v1742
        %v1983 = vmul.f32 %v1967, %v1743
        %v1984 = vmul.f32 %v1968, %v1744
        %v1985 = vmul.f32 %v1969, %v1745
        %v1986 = vmul.f32 %v1970, %v1746
        %v1987 = vmul.f32 %v1971, %v1747
        %v1988 = vmul.f32 %v1972, %v1748
        %v1989 = vmul.f32 %v1973, %v1749
        %v1990 = vmul.f32 %v1974, 1.442695
        %v1991 = vpow.pop %v1990
        %v1992 = vmul.f32 %v1975, 1.442695
        %v1993 = vpow.pop %v1992
        %v1994 = vmul.f32 %v1976, 1.442695
        %v1995 = vpow.pop %v1994
        %v1996 = vmul.f32 %v1977, 1.442695
        %v1997 = vpow.pop %v1996
        %v1998 = vmul.f32 %v1978, 1.442695
        %v1999 = vpow.pop %v1998
        %v2000 = vmul.f32 %v1979, 1.442695
        %v2001 = vpow.pop %v2000
        %v2002 = vmul.f32 %v1980, 1.442695
        %v2003 = vpow.pop %v2002
        %v2004 = vmul.f32 %v1981, 1.442695
        %v2005 = vpow.pop %v2004
        %v2006 = vmul.f32 %v1982, 1.442695
        %v2007 = vpow.pop %v2006
        %v2008 = vmul.f32 %v1983, 1.442695
        %v2009 = vpow.pop %v2008
        %v2010 = vmul.f32 %v1984, 1.442695
        %v2011 = vpow.pop %v2010
        %v2012 = vmul.f32 %v1985, 1.442695
        %v2013 = vpow.pop %v2012
        %v2014 = vmul.f32 %v1986, 1.442695
        %v2015 = vpow.pop %v2014
        %v2016 = vmul.f32 %v1987, 1.442695
        %v2017 = vpow.pop %v2016
        %v2018 = vmul.f32 %v1988, 1.442695
        %v2019 = vpow.pop %v2018
        %v2020 = vmul.f32 %v1989, 1.442695
        %v2021 = vpow.pop %v2020
        %v2022 = vmul.f32 %v1942, %v1991
        %v2023 = vmul.f32 %v1943, %v1993
        %v2024 = vmul.f32 %v1944, %v1995
        %v2025 = vmul.f32 %v1945, %v1997
        %v2026 = vmul.f32 %v1946, %v1999
        %v2027 = vmul.f32 %v1947, %v2001
        %v2028 = vmul.f32 %v1948, %v2003
        %v2029 = vmul.f32 %v1949, %v2005
        %v2030 = vmul.f32 %v1950, %v2007
        %v2031 = vmul.f32 %v1951, %v2009
        %v2032 = vmul.f32 %v1952, %v2011
        %v2033 = vmul.f32 %v1953, %v2013
        %v2034 = vmul.f32 %v1954, %v2015
        %v2035 = vmul.f32 %v1955, %v2017
        %v2036 = vmul.f32 %v1956, %v2019
        %v2037 = vmul.f32 %v1957, %v2021
        %v2038 = vsub.f32 1.0, %v2022
        %v2039 = vsub.f32 1.0, %v2023
        %v2040 = vsub.f32 1.0, %v2024
        %v2041 = vsub.f32 1.0, %v2025
        %v2042 = vsub.f32 1.0, %v2026
        %v2043 = vsub.f32 1.0, %v2027
        %v2044 = vsub.f32 1.0, %v2028
        %v2045 = vsub.f32 1.0, %v2029
        %v2046 = vsub.f32 1.0, %v2030
        %v2047 = vsub.f32 1.0, %v2031
        %v2048 = vsub.f32 1.0, %v2032
        %v2049 = vsub.f32 1.0, %v2033
        %v2050 = vsub.f32 1.0, %v2034
        %v2051 = vsub.f32 1.0, %v2035
        %v2052 = vsub.f32 1.0, %v2036
        %v2053 = vsub.f32 1.0, %v2037
        %vm2054 = vcmp.ge.f32.partialorder %v1718, 0.0
        %vm2055 = vcmp.ge.f32.partialorder %v1719, 0.0
        %vm2056 = vcmp.ge.f32.partialorder %v1720, 0.0
        %vm2057 = vcmp.ge.f32.partialorder %v1721, 0.0
        %vm2058 = vcmp.ge.f32.partialorder %v1722, 0.0
        %vm2059 = vcmp.ge.f32.partialorder %v1723, 0.0
        %vm2060 = vcmp.ge.f32.partialorder %v1724, 0.0
        %vm2061 = vcmp.ge.f32.partialorder %v1725, 0.0
        %vm2062 = vcmp.ge.f32.partialorder %v1726, 0.0
        %vm2063 = vcmp.ge.f32.partialorder %v1727, 0.0
        %vm2064 = vcmp.ge.f32.partialorder %v1728, 0.0
        %vm2065 = vcmp.ge.f32.partialorder %v1729, 0.0
        %vm2066 = vcmp.ge.f32.partialorder %v1730, 0.0
        %vm2067 = vcmp.ge.f32.partialorder %v1731, 0.0
        %vm2068 = vcmp.ge.f32.partialorder %v1732, 0.0
        %vm2069 = vcmp.ge.f32.partialorder %v1733, 0.0
        %v2070 = vsub.f32 0.0, %v2038
        %v2071 = vsub.f32 0.0, %v2039
        %v2072 = vsub.f32 0.0, %v2040
        %v2073 = vsub.f32 0.0, %v2041
        %v2074 = vsub.f32 0.0, %v2042
        %v2075 = vsub.f32 0.0, %v2043
        %v2076 = vsub.f32 0.0, %v2044
        %v2077 = vsub.f32 0.0, %v2045
        %v2078 = vsub.f32 0.0, %v2046
        %v2079 = vsub.f32 0.0, %v2047
        %v2080 = vsub.f32 0.0, %v2048
        %v2081 = vsub.f32 0.0, %v2049
        %v2082 = vsub.f32 0.0, %v2050
        %v2083 = vsub.f32 0.0, %v2051
        %v2084 = vsub.f32 0.0, %v2052
        %v2085 = vsub.f32 0.0, %v2053
        %v2086 = vsel %vm2054, %v2038, %v2070
        %v2087 = vsel %vm2055, %v2039, %v2071
        %v2088 = vsel %vm2056, %v2040, %v2072
        %v2089 = vsel %vm2057, %v2041, %v2073
        %v2090 = vsel %vm2058, %v2042, %v2074
        %v2091 = vsel %vm2059, %v2043, %v2075
        %v2092 = vsel %vm2060, %v2044, %v2076
        %v2093 = vsel %vm2061, %v2045, %v2077
        %v2094 = vsel %vm2062, %v2046, %v2078
        %v2095 = vsel %vm2063, %v2047, %v2079
        %v2096 = vsel %vm2064, %v2048, %v2080
        %v2097 = vsel %vm2065, %v2049, %v2081
        %v2098 = vsel %vm2066, %v2050, %v2082
        %v2099 = vsel %vm2067, %v2051, %v2083
        %v2100 = vsel %vm2068, %v2052, %v2084
        %v2101 = vsel %vm2069, %v2053, %v2085
        %v2102 = vadd.f32 %v2086, 1.0
        %v2103 = vadd.f32 %v2087, 1.0
        %v2104 = vadd.f32 %v2088, 1.0
        %v2105 = vadd.f32 %v2089, 1.0
        %v2106 = vadd.f32 %v2090, 1.0
        %v2107 = vadd.f32 %v2091, 1.0
        %v2108 = vadd.f32 %v2092, 1.0
        %v2109 = vadd.f32 %v2093, 1.0
        %v2110 = vadd.f32 %v2094, 1.0
        %v2111 = vadd.f32 %v2095, 1.0
        %v2112 = vadd.f32 %v2096, 1.0
        %v2113 = vadd.f32 %v2097, 1.0
        %v2114 = vadd.f32 %v2098, 1.0
        %v2115 = vadd.f32 %v2099, 1.0
        %v2116 = vadd.f32 %v2100, 1.0
        %v2117 = vadd.f32 %v2101, 1.0
        %v2118 = vmul.f32 %v1702, %v2102
        %v2119 = vmul.f32 %v1703, %v2103
        %v2120 = vmul.f32 %v1704, %v2104
        %v2121 = vmul.f32 %v1705, %v2105
        %v2122 = vmul.f32 %v1706, %v2106
        %v2123 = vmul.f32 %v1707, %v2107
        %v2124 = vmul.f32 %v1708, %v2108
        %v2125 = vmul.f32 %v1709, %v2109
        %v2126 = vmul.f32 %v1710, %v2110
        %v2127 = vmul.f32 %v1711, %v2111
        %v2128 = vmul.f32 %v1712, %v2112
        %v2129 = vmul.f32 %v1713, %v2113
        %v2130 = vmul.f32 %v1714, %v2114
        %v2131 = vmul.f32 %v1715, %v2115
        %v2132 = vmul.f32 %v1716, %v2116
        %v2133 = vmul.f32 %v1717, %v2117
        %v2134 = vld [vmem:[%s7] sm:$0xff]
        %v2135 = vld [vmem:[%s7 + $0x8] sm:$0xff]
        %v2136 = vld [vmem:[%s7 + $0x10] sm:$0xff]
        %v2137 = vld [vmem:[%s7 + $0x18] sm:$0xff]
        %v2138 = vld [vmem:[%s7 + $0x20] sm:$0xff]
        %v2139 = vld [vmem:[%s7 + $0x28] sm:$0xff]
        %v2140 = vld [vmem:[%s7 + $0x30] sm:$0xff]
        %v2141 = vld [vmem:[%s7 + $0x38] sm:$0xff]
        %v2142 = vpack.c.bf16 %v2135, %v2134
        %v2143 = vpack.c.bf16 %v2137, %v2136
        %v2144 = vpack.c.bf16 %v2139, %v2138
        %v2145 = vpack.c.bf16 %v2141, %v2140
        %v2146 = vpack.c.bf16 %v2119, %v2118
        %v2147 = vpack.c.bf16 %v2121, %v2120
        %v2148 = vpack.c.bf16 %v2123, %v2122
        %v2149 = vpack.c.bf16 %v2125, %v2124
        %v2150 = vpack.c.bf16 %v2127, %v2126
        %v2151 = vpack.c.bf16 %v2129, %v2128
        %v2152 = vpack.c.bf16 %v2131, %v2130
        %v2153 = vpack.c.bf16 %v2133, %v2132
        %v2154 = vld [vmem:[%s8] sm:$0xff]
        %v2155 = vld [vmem:[%s8 + $0x8] sm:$0xff]
        %v2156 = vld [vmem:[%s8 + $0x10] sm:$0xff]
        %v2157 = vld [vmem:[%s8 + $0x18] sm:$0xff]
        %v2158 = vld [vmem:[%s8 + $0x20] sm:$0xff]
        %v2159 = vld [vmem:[%s8 + $0x28] sm:$0xff]
        %v2160 = vld [vmem:[%s8 + $0x30] sm:$0xff]
        %v2161 = vld [vmem:[%s8 + $0x38] sm:$0xff]
        %2163 = vset.pattern.permute.xlu0 0
        %2164 = vperm.xlu0 %2163, %v2154
        %v2165 = vpop.permute.xlu0 %2164
        %2168 = vset.pattern.permute.xlu0 0
        %2169 = vperm.xlu0 %2168, %v2155
        %v2170 = vpop.permute.xlu0 %2169
        %2173 = vset.pattern.permute.xlu0 0
        %2174 = vperm.xlu0 %2173, %v2156
        %v2175 = vpop.permute.xlu0 %2174
        %2178 = vset.pattern.permute.xlu0 0
        %2179 = vperm.xlu0 %2178, %v2157
        %v2180 = vpop.permute.xlu0 %2179
        %2183 = vset.pattern.permute.xlu0 0
        %2184 = vperm.xlu0 %2183, %v2158
        %v2185 = vpop.permute.xlu0 %2184
        %2188 = vset.pattern.permute.xlu0 0
        %2189 = vperm.xlu0 %2188, %v2159
        %v2190 = vpop.permute.xlu0 %2189
        %2193 = vset.pattern.permute.xlu0 0
        %2194 = vperm.xlu0 %2193, %v2160
        %v2195 = vpop.permute.xlu0 %2194
        %2198 = vset.pattern.permute.xlu0 0
        %2199 = vperm.xlu0 %2198, %v2161
        %v2200 = vpop.permute.xlu0 %2199
        %2202 = vmatprep.subr.bf16.mxu0 0
        %2203 = vmatpush1.bf16.msra.mxu0 %v2153
        %2204 = vmatprep.subr.bf16.mxu0 0
        %2205 = vmatpush1.bf16.msra.mxu0 %v2152
        %2206 = vmatprep.subr.bf16.mxu0 0
        %2207 = vmatpush1.bf16.msra.mxu0 %v2151
        %2208 = vmatprep.subr.bf16.mxu0 0
        %2209 = vmatpush1.bf16.msra.mxu0 %v2150
        %2210 = vmatprep.subr.bf16.mxu0 0
        %2211 = vmatpush1.bf16.msra.mxu0 %v2149
        %2212 = vmatprep.subr.bf16.mxu0 0
        %2213 = vmatpush1.bf16.msra.mxu0 %v2148
        %2214 = vmatprep.subr.bf16.mxu0 0
        %2215 = vmatpush1.bf16.msra.mxu0 %v2147
        %2216 = vmatprep.subr.bf16.mxu0 0
        %2217 = vmatpush1.bf16.msra.mxu0 %v2146
        %2218 = vmatprep.subr.bf16.mxu0 0
        %2219 = vmatpush2.bf16.msra.mxu0 0
        %2220 = vmatprep.subr.bf16.mxu0 0
        %2221 = vmatpush2.bf16.msra.mxu0 0
        %2222 = vmatprep.subr.bf16.mxu0 0
        %2223 = vmatpush2.bf16.msra.mxu0 0
        %2224 = vmatprep.subr.bf16.mxu0 0
        %2225 = vmatpush2.bf16.msra.mxu0 0
        %2226 = vmatprep.subr.bf16.mxu0 0
        %2227 = vmatpush2.bf16.msra.mxu0 0
        %2228 = vmatprep.subr.bf16.mxu0 0
        %2229 = vmatpush2.bf16.msra.mxu0 0
        %2230 = vmatprep.subr.bf16.mxu0 0
        %2231 = vmatpush2.bf16.msra.mxu0 0
        %2232 = vmatprep.subr.bf16.mxu0 0
        %2233 = vmatpush2.bf16.msra.mxu0 0
        %2234 = vmatprep.mubr.bf16.mxu0 0
        %2235 = vmatmul.mubr.bf16.gmra.mxu0 %v2142
        %v2236 = vpop.f32.mrf.mxu0
        %v2237 = vadd.f32 %v2165, %v2236
        %v2238 = vpop.f32.mrf.mxu0
        %v2239 = vpop.f32.mrf.mxu0
        %v2240 = vadd.f32 %v2170, %v2239
        %v2241 = vpop.f32.mrf.mxu0
        %2242 = vmatprep.mubr.bf16.mxu0 0
        %2243 = vmatmul.mubr.bf16.gmra.mxu0 %v2143
        %v2244 = vpop.f32.mrf.mxu0
        %v2245 = vadd.f32 %v2175, %v2244
        %v2246 = vpop.f32.mrf.mxu0
        %v2247 = vpop.f32.mrf.mxu0
        %v2248 = vadd.f32 %v2180, %v2247
        %v2249 = vpop.f32.mrf.mxu0
        %2250 = vmatprep.mubr.bf16.mxu0 0
        %2251 = vmatmul.mubr.bf16.gmra.mxu0 %v2144
        %v2252 = vpop.f32.mrf.mxu0
        %v2253 = vadd.f32 %v2185, %v2252
        %v2254 = vpop.f32.mrf.mxu0
        %v2255 = vpop.f32.mrf.mxu0
        %v2256 = vadd.f32 %v2190, %v2255
        %v2257 = vpop.f32.mrf.mxu0
        %2258 = vmatprep.mubr.bf16.mxu0 0
        %2259 = vmatmul.mubr.bf16.gmra.mxu0 %v2145
        %v2260 = vpop.f32.mrf.mxu0
        %v2261 = vadd.f32 %v2195, %v2260
        %v2262 = vpop.f32.mrf.mxu0
        %v2263 = vpop.f32.mrf.mxu0
        %v2264 = vadd.f32 %v2200, %v2263
        %v2265 = vpop.f32.mrf.mxu0
        %2266 = vdwg.mxu0
        %v2267 = vld [vmem:[%s9] sm:$0xff]
        %v2268 = vld [vmem:[%s9 + $0x8] sm:$0xff]
        %v2269 = vld [vmem:[%s9 + $0x10] sm:$0xff]
        %v2270 = vld [vmem:[%s9 + $0x18] sm:$0xff]
        %v2271 = vld [vmem:[%s9 + $0x20] sm:$0xff]
        %v2272 = vld [vmem:[%s9 + $0x28] sm:$0xff]
        %v2273 = vld [vmem:[%s9 + $0x30] sm:$0xff]
        %v2274 = vld [vmem:[%s9 + $0x38] sm:$0xff]
        %2276 = vset.pattern.permute.xlu0 0
        %2277 = vperm.xlu0 %2276, %v2267
        %v2278 = vpop.permute.xlu0 %2277
        %2281 = vset.pattern.permute.xlu0 0
        %2282 = vperm.xlu0 %2281, %v2268
        %v2283 = vpop.permute.xlu0 %2282
        %2286 = vset.pattern.permute.xlu0 0
        %2287 = vperm.xlu0 %2286, %v2269
        %v2288 = vpop.permute.xlu0 %2287
        %2291 = vset.pattern.permute.xlu0 0
        %2292 = vperm.xlu0 %2291, %v2270
        %v2293 = vpop.permute.xlu0 %2292
        %2296 = vset.pattern.permute.xlu0 0
        %2297 = vperm.xlu0 %2296, %v2271
        %v2298 = vpop.permute.xlu0 %2297
        %2301 = vset.pattern.permute.xlu0 0
        %2302 = vperm.xlu0 %2301, %v2272
        %v2303 = vpop.permute.xlu0 %2302
        %2306 = vset.pattern.permute.xlu0 0
        %2307 = vperm.xlu0 %2306, %v2273
        %v2308 = vpop.permute.xlu0 %2307
        %2311 = vset.pattern.permute.xlu0 0
        %2312 = vperm.xlu0 %2311, %v2274
        %v2313 = vpop.permute.xlu0 %2312
        %v2315 = vmul.f32 %v2278, %v2237
        %v2316 = vmul.f32 %v2283, %v2240
        %v2317 = vmul.f32 %v2288, %v2245
        %v2318 = vmul.f32 %v2293, %v2248
        %v2319 = vmul.f32 %v2298, %v2253
        %v2320 = vmul.f32 %v2303, %v2256
        %v2321 = vmul.f32 %v2308, %v2261
        %v2322 = vmul.f32 %v2313, %v2264
        %2331 = vrot.lane.b32.xlu0 %v2315, 3
        %v2332 = vpop.permute.xlu0 %2331
        %2333 = vrot.lane.b32.xlu0 %v2316, 3
        %v2334 = vpop.permute.xlu0 %2333
        %2335 = vrot.lane.b32.xlu0 %v2317, 3
        %v2336 = vpop.permute.xlu0 %2335
        %2337 = vrot.lane.b32.xlu0 %v2318, 3
        %v2338 = vpop.permute.xlu0 %2337
        %2339 = vrot.lane.b32.xlu0 %v2319, 3
        %v2340 = vpop.permute.xlu0 %2339
        %2341 = vrot.lane.b32.xlu0 %v2320, 3
        %v2342 = vpop.permute.xlu0 %2341
        %2343 = vrot.lane.b32.xlu0 %v2321, 3
        %v2344 = vpop.permute.xlu0 %2343
        %2345 = vrot.lane.b32.xlu0 %v2322, 3
        %v2346 = vpop.permute.xlu0 %2345
        %v2355 = vadd.f32 %v427, %v2332
        %v2356 = vadd.f32 %v428, %v2332
        %v2357 = vadd.f32 %v429, %v2334
        %v2358 = vadd.f32 %v430, %v2334
        %v2359 = vadd.f32 %v431, %v2336
        %v2360 = vadd.f32 %v432, %v2336
        %v2361 = vadd.f32 %v433, %v2338
        %v2362 = vadd.f32 %v434, %v2338
        %v2363 = vadd.f32 %v435, %v2340
        %v2364 = vadd.f32 %v436, %v2340
        %v2365 = vadd.f32 %v437, %v2342
        %v2366 = vadd.f32 %v438, %v2342
        %v2367 = vadd.f32 %v439, %v2344
        %v2368 = vadd.f32 %v440, %v2344
        %v2369 = vadd.f32 %v441, %v2346
        %v2370 = vadd.f32 %v442, %v2346
        %2387 = vrot.lane.b32.xlu0 %v2355, 125
        %v2388 = vpop.permute.xlu0 %2387
        %2389 = vrot.lane.b32.xlu0 %v2356, 125
        %v2390 = vpop.permute.xlu0 %2389
        %2391 = vrot.lane.b32.xlu0 %v2357, 125
        %v2392 = vpop.permute.xlu0 %2391
        %2393 = vrot.lane.b32.xlu0 %v2358, 125
        %v2394 = vpop.permute.xlu0 %2393
        %2395 = vrot.lane.b32.xlu0 %v2359, 125
        %v2396 = vpop.permute.xlu0 %2395
        %2397 = vrot.lane.b32.xlu0 %v2360, 125
        %v2398 = vpop.permute.xlu0 %2397
        %2399 = vrot.lane.b32.xlu0 %v2361, 125
        %v2400 = vpop.permute.xlu0 %2399
        %2401 = vrot.lane.b32.xlu0 %v2362, 125
        %v2402 = vpop.permute.xlu0 %2401
        %2403 = vrot.lane.b32.xlu0 %v2363, 125
        %v2404 = vpop.permute.xlu0 %2403
        %2405 = vrot.lane.b32.xlu0 %v2364, 125
        %v2406 = vpop.permute.xlu0 %2405
        %2407 = vrot.lane.b32.xlu0 %v2365, 125
        %v2408 = vpop.permute.xlu0 %2407
        %2409 = vrot.lane.b32.xlu0 %v2366, 125
        %v2410 = vpop.permute.xlu0 %2409
        %2411 = vrot.lane.b32.xlu0 %v2367, 125
        %v2412 = vpop.permute.xlu0 %2411
        %2413 = vrot.lane.b32.xlu0 %v2368, 125
        %v2414 = vpop.permute.xlu0 %2413
        %2415 = vrot.lane.b32.xlu0 %v2369, 125
        %v2416 = vpop.permute.xlu0 %2415
        %2417 = vrot.lane.b32.xlu0 %v2370, 125
        %v2418 = vpop.permute.xlu0 %2417
        %v2419 = vsel %vm845, %v2388, %v2390
        %v2420 = vsel %vm845, %v2392, %v2394
        %v2421 = vsel %vm845, %v2396, %v2398
        %v2422 = vsel %vm845, %v2400, %v2402
        %v2423 = vsel %vm845, %v2404, %v2406
        %v2424 = vsel %vm845, %v2408, %v2410
        %v2425 = vsel %vm845, %v2412, %v2414
        %v2426 = vsel %vm845, %v2416, %v2418
        %2435 = vst [vmem:[%s406] sm:$0xff] %v2419
        %2436 = vst [vmem:[%s406 + $0x8] sm:$0xff] %v2420
        %2437 = vst [vmem:[%s406 + $0x10] sm:$0xff] %v2421
        %2438 = vst [vmem:[%s406 + $0x18] sm:$0xff] %v2422
        %2439 = vst [vmem:[%s406 + $0x20] sm:$0xff] %v2423
        %2440 = vst [vmem:[%s406 + $0x28] sm:$0xff] %v2424
        %2441 = vst [vmem:[%s406 + $0x30] sm:$0xff] %v2425
        %2442 = vst [vmem:[%s406 + $0x38] sm:$0xff] %v2426
        %s2443 = sand.u32 %s273, 1
        %s2444 = scalar_lea.sflag [#allocation3], %s2443
        %s2445 = sand.u32 %s273, 1
        %s2446 = smul.addr %s2445, 64
        %s2447 = scalar_lea.vmem [#allocation2], %s2446
        // Predicated region
        $region61: #{convnext_block_forward.1} parent=59 // pred_check
          %p2448 = pneg %p283
        $region62: #{convnext_block_forward.1} parent=59 // pred_check_branch
          %2450 = sbr.rel (%p2448) target = $region64
        $region63: #{convnext_block_forward.1} parent=59 // pred_region
          %s2452 = ssub.s32 1024, 1024
          %2453 = vsyncadd %s2444, %s2452
          %s2454 = smul.addr %s28, 16
          %s2455 = sadd.s32 %s29, %s2454
          %s2456 = smul.addr %s2455, 128
          %s2457 = scalar_lea.hbm %s10, %s2456
          %s2458 = sshll.u32 %s2447, 4
          %s2459 = int_to_ptr.vmem [resolvable:$true] %s2458
          %2464 = dma.vmem_to_hbm [thread:$0]  %s2459, 1024, %s2457, %s2444, 128, 256, 8
        $region64: #{convnext_block_forward.1} parent=59 // pred_fallthru
          _
      $region60: #{convnext_block_forward.1} parent=5 // pred_fallthru
        _
      %p2465 = scmp.le.s32.totalorder 2, %s19
      // Predicated region
      $region65: #{convnext_block_forward.1} parent=5 // pred_check
        %p2466 = pneg %p2465
      $region66: #{convnext_block_forward.1} parent=5 // pred_check_branch
        %2468 = sbr.rel (%p2466) target = $region68
      $region67: #{convnext_block_forward.1} parent=5 // pred_region
        %s2469 = ssub.s32 %s19, 2
        // Predicated region
        $region69: #{convnext_block_forward.1} parent=67 // pred_check
          %p2470 = pneg %p289
        $region70: #{convnext_block_forward.1} parent=67 // pred_check_branch
          %2472 = sbr.rel (%p2470) target = $region72
        $region71: #{convnext_block_forward.1} parent=67 // pred_region
          %s2473 = sand.u32 %s274, 1
          %s2474 = scalar_lea.sflag [#allocation3], %s2473
          %s2475 = sand.u32 %s274, 1
          %s2476 = smul.addr %s2475, 64
          %s2477 = scalar_lea.vmem [#allocation2], %s2476
          %2478 = dma.done %s2474, 1024
        $region72: #{convnext_block_forward.1} parent=67 // pred_fallthru
          _
      $region68: #{convnext_block_forward.1} parent=5 // pred_fallthru
        _
    $region6: #{convnext_block_forward.1} parent=1 // loop_footer
      %s23 = sadd.s32 1, %s19
    $region7: #{convnext_block_forward.1} parent=1 // loop_footer_branch
      %18 = sbr.rel target = $region3
    $region8: #{convnext_block_forward.1} parent=1 // loop_exit
      _
    %2479 = vsyncpa [#allocation3], 1
    %s2480 = scalar_lea.sflag [#allocation3], 1
    %2481 = vsyncpa %s2480, 1

</llo_original>
